<compile_context>
chip_gen: v7x
topology: tpu7x:2x2x1
jax: 0.10.0
libtpu: 0.0.40
codegen_flags: <defaults>
</compile_context>

<pallas_src>
import numpy as np
import jax
import jax.numpy as jnp
from jax import lax
from jax.experimental import pallas as pl
from jax.experimental.pallas import tpu as pltpu

BN_EPS = 1e-5
EDGES_PER_GROUP = 8          # sublane-aligned edge block per relation group


def _full_spec(shape):
    # whole-array block, single grid step
    return pl.BlockSpec(shape, lambda i, n=len(shape): (0,) * n)


def _build_relation_groups(src, dst, etype, te=EDGES_PER_GROUP):
    """Host-side graph preprocessing (glue, analogous to DGL batched-graph prep):
    sort edges by relation and chunk each relation's edges into fixed-size blocks of
    `te` edges (padded slots get valid=0) so the kernel applies one relation weight
    per block with a dense MXU matmul."""
    src = np.asarray(src, np.int32)
    dst = np.asarray(dst, np.int32)
    et = np.asarray(etype, np.int32)
    order = np.argsort(et, kind="stable")
    src, dst, et = src[order], dst[order], et[order]
    rel_ids, src_blk, dst_blk, val_blk = [], [], [], []
    for r in np.unique(et):
        sel = np.nonzero(et == r)[0]
        for off in range(0, sel.size, te):
            chunk = sel[off:off + te]
            pad = te - chunk.size
            rel_ids.append(int(r))
            src_blk.append(np.pad(src[chunk], (0, pad)))
            dst_blk.append(np.pad(dst[chunk], (0, pad)))
            val_blk.append(np.pad(np.ones(chunk.size, np.float32), (0, pad)))
    rel_ids = np.asarray(rel_ids, np.int32)                     # [G_grp]
    src_col = np.asarray(src_blk, np.int32)[:, :, None]         # [G_grp, te, 1]
    dst_row = np.asarray(dst_blk, np.int32)[:, None, :]         # [G_grp, 1, te]
    val_row = np.asarray(val_blk, np.float32)[:, None, :]       # [G_grp, 1, te]
    return rel_ids, src_col, dst_row, val_row


# ------------------------- fused RGCN + pooling kernel -------------------------

def _make_fused_kernel(num_layers):
    def kernel(*refs):
        src_ref, dst_ref, val_ref, gid_ref, h0_ref = refs[:5]
        layer_refs = refs[5:5 + 6 * num_layers]
        wg_ref, bg_ref, readout_ref, attn_ref = refs[5 + 6 * num_layers:]

        n_groups, te, _ = src_ref.shape
        n_pad = h0_ref.shape[0]
        n_graphs = readout_ref.shape[0]

        h = h0_ref[...]                                         # [n_pad, Din0] f32, stays in VMEM across layers

        for l in range(num_layers):
            (wu_ref, wres_ref, bconv_ref, bres_ref,
             scale_ref, shift_ref) = layer_refs[6 * l:6 * l + 6]
            dout = wu_ref.shape[2]
            h_bf = h.astype(jnp.bfloat16)

            def group_body(g, acc):
                # one relation group: `te` edges sharing a single relation weight
                src_col = src_ref[g]                            # [te, 1] int32
                dst_row = dst_ref[g]                            # [1, te] int32
                vrow = val_ref[g]                               # [1, te] f32 (0 on padded edge slots)
                gath = (src_col == lax.broadcasted_iota(jnp.int32, (te, n_pad), 1)
                        ).astype(jnp.float32)                   # [te, n_pad] gather one-hot (in-register)
                scat = (lax.broadcasted_iota(jnp.int32, (n_pad, te), 0) == dst_row
                        ).astype(jnp.float32) * vrow            # [n_pad, te] scatter-add one-hot
                hsrc = jnp.dot(gath, h, preferred_element_type=jnp.float32)           # [te, Din]
                msg = jnp.dot(hsrc.astype(jnp.bfloat16), wu_ref[g],
                              preferred_element_type=jnp.float32)                     # [te, dout] bf16 MXU
                return acc + jnp.dot(scat, msg, preferred_element_type=jnp.float32)   # [n_pad, dout]

            agg = lax.fori_loop(0, n_groups, group_body,
                                jnp.zeros((n_pad, dout), jnp.float32))
            # TODO(synk): RelGraphConv dropout (p=0.5) is identity in eval mode; not modeled.
            agg = jnp.maximum(agg + bconv_ref[...], 0.0)        # conv bias + ReLU
            res = jnp.maximum(
                jnp.dot(h_bf, wres_ref[...], preferred_element_type=jnp.float32) + bres_ref[...],
                0.0)                                            # residual branch
            h = (agg + res) * scale_ref[...] + shift_ref[...]   # folded BatchNorm1d (eval)

        # ---------------- GlobalAttentionPooling (gate_nn = Linear(D, 1)) ----------------
        gate = lax.dot_general(wg_ref[...], h, (((1,), (1,)), ((), ())),
                               preferred_element_type=jnp.float32) + bg_ref[...]       # [1, n_pad]
        member = lax.broadcasted_iota(jnp.int32, (n_graphs, n_pad), 0) == gid_ref[...]  # [G, n_pad]
        logits = jnp.where(member, gate, jnp.float32(-1e30))
        gmax = jnp.max(logits, axis=1, keepdims=True)                                   # [G, 1]
        e = jnp.where(member, jnp.exp(gate - gmax), 0.0)                                # [G, n_pad]
        z = jnp.sum(e, axis=1, keepdims=True)
        attn = e / jnp.maximum(z, 1e-30)                        # guard graphs with zero member nodes
        readout_ref[...] = jnp.dot(attn, h, preferred_element_type=jnp.float32)         # [G, D] lane-dense
        attn_ref[...] = jnp.sum(attn, axis=0, keepdims=True)    # [1, n_pad] (disjoint graph membership)

    return kernel


# ----------------------------- wrapper / glue -----------------------------

def graph_knowledge_extractor_forward(node_feats, src, dst, etype, graph_ids,
                                      num_graphs, layer_params, gate_params):
    N, din0 = node_feats.shape
    n_pad = ((N + 127) // 128) * 128                            # lane-dense attention output + aligned one-hots
    rel_ids, src_col, dst_row, val_row = _build_relation_groups(src, dst, etype)

    h0 = jnp.zeros((n_pad, din0), jnp.float32).at[:N, :].set(node_feats.astype(jnp.float32))
    gid_row = jnp.full((1, n_pad), num_graphs, jnp.int32).at[0, :N].set(
        jnp.asarray(graph_ids, jnp.int32))                      # padded nodes get out-of-range graph id

    args = [jnp.asarray(src_col), jnp.asarray(dst_row), jnp.asarray(val_row), gid_row, h0]
    for lp in layer_params:
        scale = lp['gamma'] * lax.rsqrt(lp['var'] + BN_EPS)     # fold BatchNorm (eval) into scale/shift
        shift = lp['beta'] - lp['mean'] * scale
        # TODO(synk): at large edge counts keep w_rel HBM-resident (memory_space=pl.ANY) and DMA the
        # per-group [Din, Dout] slice inside the kernel instead of this wrapper-side gather.
        args += [lp['w_rel'][rel_ids].astype(jnp.bfloat16),     # [G_grp, Din, Dout] only relations present
                 lp['w_res'].astype(jnp.bfloat16),
                 lp['bias'].astype(jnp.float32),
                 lp['b_res'].astype(jnp.float32),
                 scale.astype(jnp.float32),
                 shift.astype(jnp.float32)]
    args += [gate_params['w_gate'].astype(jnp.float32), gate_params['b_gate'].astype(jnp.float32)]

    d_last = layer_params[-1]['w_res'].shape[1]
    kernel = _make_fused_kernel(len(layer_params))
    # TODO(synk): at realistic N/E add a (node-block, relation-group) grid with a "parallel" node axis
    # (v7x megacore) and pipelined edge/weight blocks; at this size one fused launch is fastest.
    readout, attn_row = pl.pallas_call(
        kernel,
        out_shape=(jax.ShapeDtypeStruct((num_graphs, d_last), jnp.float32),
                   jax.ShapeDtypeStruct((1, n_pad), jnp.float32)),
        grid=(1,),
        in_specs=[_full_spec(a.shape) for a in args],
        out_specs=(_full_spec((num_graphs, d_last)), _full_spec((1, n_pad))),
        compiler_params=pltpu.CompilerParams(dimension_semantics=("arbitrary",)),
    )(*args)
    return readout, attn_row[0, :N].reshape(N, 1)


# ----------------------------- params / reference -----------------------------

def init_params(key, in_feats, rgcn_hidden_feats, num_rels):
    layer_params = []
    dims = [in_feats] + list(rgcn_hidden_feats)
    for l in range(len(rgcn_hidden_feats)):
        din, dout = dims[l], dims[l + 1]
        key, k1, k2, k3, k4 = jax.random.split(key, 5)
        layer_params.append(dict(
            w_rel=jax.random.normal(k1, (num_rels, din, dout), jnp.float32) * 0.05,
            bias=jax.random.normal(k2, (1, dout), jnp.float32) * 0.05,
            w_res=jax.random.normal(k3, (din, dout), jnp.float32) * 0.05,
            b_res=jax.random.normal(k4, (1, dout), jnp.float32) * 0.05,
            gamma=jnp.ones((1, dout), jnp.float32),     # BatchNorm1d defaults (eval)
            beta=jnp.zeros((1, dout), jnp.float32),
            mean=jnp.zeros((1, dout), jnp.float32),
            var=jnp.ones((1, dout), jnp.float32),
        ))
    key, kg, kb = jax.random.split(key, 3)
    gate_params = dict(
        w_gate=jax.random.normal(kg, (1, rgcn_hidden_feats[-1]), jnp.float32) * 0.05,
        b_gate=jax.random.normal(kb, (1, 1), jnp.float32) * 0.05,
    )
    return layer_params, gate_params


def _reference_forward(node_feats, src, dst, etype, graph_ids, num_graphs,
                       layer_params, gate_params):
    """Pure-JAX f32 reference mirroring the PyTorch module in eval mode."""
    h = node_feats
    for lp in layer_params:
        w_e = lp['w_rel'][etype]                                     # [E, Din, Dout]
        msg = jnp.einsum('ei,eio->eo', h[src], w_e)
        agg = jnp.zeros((h.shape[0], w_e.shape[2]), jnp.float32).at[dst].add(msg)
        agg = jax.nn.relu(agg + lp['bias'])
        res = jax.nn.relu(h @ lp['w_res'] + lp['b_res'])
        y = agg + res
        h = (y - lp['mean']) * lax.rsqrt(lp['var'] + BN_EPS) * lp['gamma'] + lp['beta']
    gate = h @ gate_params['w_gate'].T + gate_params['b_gate']       # [N, 1]
    member = jax.nn.one_hot(graph_ids, num_graphs, dtype=jnp.float32).T > 0   # [G, N]
    logits = jnp.where(member, gate.T, -jnp.inf)
    attn = jnp.where(member, jax.nn.softmax(logits, axis=1), 0.0)    # [G, N]
    readout = attn @ h
    attention = jnp.sum(attn, axis=0)[:, None]
    return readout, attention


if __name__ == "__main__":
    key = jax.random.PRNGKey(0)
    in_feats = 32
    rgcn_hidden_feats = (64, 256)       # last hidden must be 256: gate_nn = Linear(256, 1)
    num_rels = 64 * 21                  # hard-coded in RGCNLayer
    N, E, G = 16, 32, 2                 # nodes, edges, graphs in the batch

    key, kf, ks, kd, ke = jax.random.split(key, 5)
    node_feats = jax.random.normal(kf, (N, in_feats), jnp.float32)

    # two graphs of 8 nodes each; edges stay within their graph
    graph_ids = jnp.repeat(jnp.arange(G, dtype=jnp.int32), N // G)
    half = E // G
    src0 = jax.random.randint(ks, (half,), 0, N // G, dtype=jnp.int32)
    dst0 = jax.random.randint(kd, (half,), 0, N // G, dtype=jnp.int32)
    src = jnp.concatenate([src0, src0 + N // G])
    dst = jnp.concatenate([dst0, dst0 + N // G])
    etype = jax.random.randint(ke, (E,), 0, num_rels, dtype=jnp.int32)

    layer_params, gate_params = init_params(key, in_feats, rgcn_hidden_feats, num_rels)

    readout, attention = graph_knowledge_extractor_forward(
        node_feats, src, dst, etype, graph_ids, G, layer_params, gate_params)
    jax.block_until_ready((readout, attention))

    assert readout.shape == (G, rgcn_hidden_feats[-1])
    assert attention.shape == (N, 1)
    assert bool(jnp.all(jnp.isfinite(readout))) and bool(jnp.all(jnp.isfinite(attention)))

    # cross-check against the pure-JAX reference (loose tolerance for bf16 MXU operands)
    ref_ro, ref_at = _reference_forward(node_feats, src, dst, etype, graph_ids, G,
                                        layer_params, gate_params)
    np.testing.assert_allclose(np.asarray(readout), np.asarray(ref_ro), rtol=5e-2, atol=5e-2)
    np.testing.assert_allclose(np.asarray(attention), np.asarray(ref_at), rtol=5e-2, atol=5e-2)

    print("KERNEL_OK")
</pallas_src>

<mosaic_0001>
module attributes {stable_mosaic.version = 11 : i64} {
  func.func @kernel(%arg0: i32, %arg1: memref<32x8x1xi32, #tpu.memory_space<vmem>>, %arg2: memref<32x1x8xi32, #tpu.memory_space<vmem>>, %arg3: memref<32x1x8xf32, #tpu.memory_space<vmem>>, %arg4: memref<1x128xi32, #tpu.memory_space<vmem>>, %arg5: memref<128x32xf32, #tpu.memory_space<vmem>>, %arg6: memref<32x32x64xbf16, #tpu.memory_space<vmem>>, %arg7: memref<32x64xbf16, #tpu.memory_space<vmem>>, %arg8: memref<1x64xf32, #tpu.memory_space<vmem>>, %arg9: memref<1x64xf32, #tpu.memory_space<vmem>>, %arg10: memref<1x64xf32, #tpu.memory_space<vmem>>, %arg11: memref<1x64xf32, #tpu.memory_space<vmem>>, %arg12: memref<32x64x256xbf16, #tpu.memory_space<vmem>>, %arg13: memref<64x256xbf16, #tpu.memory_space<vmem>>, %arg14: memref<1x256xf32, #tpu.memory_space<vmem>>, %arg15: memref<1x256xf32, #tpu.memory_space<vmem>>, %arg16: memref<1x256xf32, #tpu.memory_space<vmem>>, %arg17: memref<1x256xf32, #tpu.memory_space<vmem>>, %arg18: memref<1x256xf32, #tpu.memory_space<vmem>>, %arg19: memref<1x1xf32, #tpu.memory_space<vmem>>, %arg20: memref<2x256xf32, #tpu.memory_space<vmem>>, %arg21: memref<1x128xf32, #tpu.memory_space<vmem>>) attributes {dimension_semantics = [#tpu.dimension_semantics<arbitrary>], iteration_bounds = array<i64: 1>, scalar_prefetch = 0 : i64, scratch_operands = 0 : i64, tpu.core_type = #tpu.core_type<tc>, window_params = [{pipeline_mode = #tpu.pipeline_mode<synchronous>, transform_indices = @transform_0, window_bounds = array<i64: 32, 8, 1>}, {pipeline_mode = #tpu.pipeline_mode<synchronous>, transform_indices = @transform_1, window_bounds = array<i64: 32, 1, 8>}, {pipeline_mode = #tpu.pipeline_mode<synchronous>, transform_indices = @transform_2, window_bounds = array<i64: 32, 1, 8>}, {pipeline_mode = #tpu.pipeline_mode<synchronous>, transform_indices = @transform_3, window_bounds = array<i64: 1, 128>}, {pipeline_mode = #tpu.pipeline_mode<synchronous>, transform_indices = @transform_4, window_bounds = array<i64: 128, 32>}, {pipeline_mode = #tpu.pipeline_mode<synchronous>, transform_indices = @transform_5, window_bounds = array<i64: 32, 32, 64>}, {pipeline_mode = #tpu.pipeline_mode<synchronous>, transform_indices = @transform_6, window_bounds = array<i64: 32, 64>}, {pipeline_mode = #tpu.pipeline_mode<synchronous>, transform_indices = @transform_7, window_bounds = array<i64: 1, 64>}, {pipeline_mode = #tpu.pipeline_mode<synchronous>, transform_indices = @transform_8, window_bounds = array<i64: 1, 64>}, {pipeline_mode = #tpu.pipeline_mode<synchronous>, transform_indices = @transform_9, window_bounds = array<i64: 1, 64>}, {pipeline_mode = #tpu.pipeline_mode<synchronous>, transform_indices = @transform_10, window_bounds = array<i64: 1, 64>}, {pipeline_mode = #tpu.pipeline_mode<synchronous>, transform_indices = @transform_11, window_bounds = array<i64: 32, 64, 256>}, {pipeline_mode = #tpu.pipeline_mode<synchronous>, transform_indices = @transform_12, window_bounds = array<i64: 64, 256>}, {pipeline_mode = #tpu.pipeline_mode<synchronous>, transform_indices = @transform_13, window_bounds = array<i64: 1, 256>}, {pipeline_mode = #tpu.pipeline_mode<synchronous>, transform_indices = @transform_14, window_bounds = array<i64: 1, 256>}, {pipeline_mode = #tpu.pipeline_mode<synchronous>, transform_indices = @transform_15, window_bounds = array<i64: 1, 256>}, {pipeline_mode = #tpu.pipeline_mode<synchronous>, transform_indices = @transform_16, window_bounds = array<i64: 1, 256>}, {pipeline_mode = #tpu.pipeline_mode<synchronous>, transform_indices = @transform_17, window_bounds = array<i64: 1, 256>}, {pipeline_mode = #tpu.pipeline_mode<synchronous>, transform_indices = @transform_18, window_bounds = array<i64: 1, 1>}, {pipeline_mode = #tpu.pipeline_mode<synchronous>, transform_indices = @transform_19, window_bounds = array<i64: 2, 256>}, {pipeline_mode = #tpu.pipeline_mode<synchronous>, transform_indices = @transform_20, window_bounds = array<i64: 1, 128>}]} {
    %c0 = arith.constant 0 : index
    %c0_0 = arith.constant 0 : index
    %0 = vector.load %arg5[%c0, %c0_0] : memref<128x32xf32, #tpu.memory_space<vmem>>, vector<128x32xf32>
    %1 = arith.truncf %0 : vector<128x32xf32> to vector<128x32xbf16>
    %cst = arith.constant 0.000000e+00 : f32
    %2 = vector.broadcast %cst : f32 to vector<128x64xf32>
    %c0_i32 = arith.constant 0 : i32
    %c32_i32 = arith.constant 32 : i32
    %3 = arith.addi %c0_i32, %c32_i32 : i32
    %c1_i32 = arith.constant 1 : i32
    %4 = scf.for %arg22 = %c0_i32 to %3 step %c1_i32 iter_args(%arg23 = %2) -> (vector<128x64xf32>)  : i32 {
      %79 = arith.index_cast %arg22 : i32 to index
      %c0_51 = arith.constant 0 : index
      %c0_52 = arith.constant 0 : index
      %80 = vector.load %arg1[%79, %c0_51, %c0_52] : memref<32x8x1xi32, #tpu.memory_space<vmem>>, vector<1x8x1xi32>
      %81 = vector.shape_cast %80 : vector<1x8x1xi32> to vector<8x1xi32>
      %82 = arith.index_cast %arg22 : i32 to index
      %c0_53 = arith.constant 0 : index
      %c0_54 = arith.constant 0 : index
      %83 = vector.load %arg2[%82, %c0_53, %c0_54] : memref<32x1x8xi32, #tpu.memory_space<vmem>>, vector<1x1x8xi32>
      %84 = vector.shape_cast %83 : vector<1x1x8xi32> to vector<1x8xi32>
      %85 = arith.index_cast %arg22 : i32 to index
      %c0_55 = arith.constant 0 : index
      %c0_56 = arith.constant 0 : index
      %86 = vector.load %arg3[%85, %c0_55, %c0_56] : memref<32x1x8xf32, #tpu.memory_space<vmem>>, vector<1x1x8xf32>
      %87 = vector.shape_cast %86 : vector<1x1x8xf32> to vector<1x8xf32>
      %88 = tpu.iota {dimensions = array<i32: 1>} : vector<8x128xi32>
      %89 = vector.broadcast %81 : vector<8x1xi32> to vector<8x128xi32>
      %90 = arith.cmpi eq, %89, %88 : vector<8x128xi32>
      %91 = arith.extui %90 : vector<8x128xi1> to vector<8x128xi32>
      %92 = arith.sitofp %91 : vector<8x128xi32> to vector<8x128xf32>
      %93 = tpu.iota {dimensions = array<i32: 0>} : vector<128x8xi32>
      %94 = vector.broadcast %84 : vector<1x8xi32> to vector<128x8xi32>
      %95 = arith.cmpi eq, %93, %94 : vector<128x8xi32>
      %96 = arith.extui %95 : vector<128x8xi1> to vector<128x8xi32>
      %97 = arith.sitofp %96 : vector<128x8xi32> to vector<128x8xf32>
      %98 = vector.broadcast %87 : vector<1x8xf32> to vector<128x8xf32>
      %99 = arith.mulf %97, %98 : vector<128x8xf32>
      %cst_57 = arith.constant dense<0.000000e+00> : vector<8x32xf32>
      %100 = tpu.matmul %92, %0, %cst_57 {dimension_numbers = #tpu.dot_dimension_numbers<[1], [0], [0], [1], [0, 0, 1, 1], [], []>} : vector<8x128xf32>, vector<128x32xf32>, vector<8x32xf32> -> vector<8x32xf32>
      %101 = arith.truncf %100 : vector<8x32xf32> to vector<8x32xbf16>
      %102 = arith.index_cast %arg22 : i32 to index
      %c0_58 = arith.constant 0 : index
      %c0_59 = arith.constant 0 : index
      %103 = vector.load %arg6[%102, %c0_58, %c0_59] : memref<32x32x64xbf16, #tpu.memory_space<vmem>>, vector<1x32x64xbf16>
      %104 = vector.shape_cast %103 : vector<1x32x64xbf16> to vector<32x64xbf16>
      %cst_60 = arith.constant dense<0.000000e+00> : vector<8x64xf32>
      %105 = tpu.matmul %101, %104, %cst_60 {dimension_numbers = #tpu.dot_dimension_numbers<[1], [0], [0], [1], [0, 0, 1, 1], [], []>} : vector<8x32xbf16>, vector<32x64xbf16>, vector<8x64xf32> -> vector<8x64xf32>
      %cst_61 = arith.constant dense<0.000000e+00> : vector<128x64xf32>
      %106 = tpu.matmul %99, %105, %cst_61 {dimension_numbers = #tpu.dot_dimension_numbers<[1], [0], [0], [1], [0, 0, 1, 1], [], []>} : vector<128x8xf32>, vector<8x64xf32>, vector<128x64xf32> -> vector<128x64xf32>
      %107 = arith.addf %arg23, %106 : vector<128x64xf32>
      scf.yield %107 : vector<128x64xf32>
    }
    %c32_i32_1 = arith.constant 32 : i32
    %c0_2 = arith.constant 0 : index
    %c0_3 = arith.constant 0 : index
    %5 = vector.load %arg8[%c0_2, %c0_3] : memref<1x64xf32, #tpu.memory_space<vmem>>, vector<1x64xf32>
    %6 = vector.broadcast %5 : vector<1x64xf32> to vector<128x64xf32>
    %7 = arith.addf %4, %6 : vector<128x64xf32>
    %cst_4 = arith.constant 0.000000e+00 : f32
    %8 = vector.broadcast %cst_4 : f32 to vector<128x64xf32>
    %9 = arith.maximumf %7, %8 : vector<128x64xf32>
    %c0_5 = arith.constant 0 : index
    %c0_6 = arith.constant 0 : index
    %10 = vector.load %arg7[%c0_5, %c0_6] : memref<32x64xbf16, #tpu.memory_space<vmem>>, vector<32x64xbf16>
    %cst_7 = arith.constant dense<0.000000e+00> : vector<128x64xf32>
    %11 = tpu.matmul %1, %10, %cst_7 {dimension_numbers = #tpu.dot_dimension_numbers<[1], [0], [0], [1], [0, 0, 1, 1], [], []>} : vector<128x32xbf16>, vector<32x64xbf16>, vector<128x64xf32> -> vector<128x64xf32>
    %c0_8 = arith.constant 0 : index
    %c0_9 = arith.constant 0 : index
    %12 = vector.load %arg9[%c0_8, %c0_9] : memref<1x64xf32, #tpu.memory_space<vmem>>, vector<1x64xf32>
    %13 = vector.broadcast %12 : vector<1x64xf32> to vector<128x64xf32>
    %14 = arith.addf %11, %13 : vector<128x64xf32>
    %cst_10 = arith.constant 0.000000e+00 : f32
    %15 = vector.broadcast %cst_10 : f32 to vector<128x64xf32>
    %16 = arith.maximumf %14, %15 : vector<128x64xf32>
    %17 = arith.addf %9, %16 : vector<128x64xf32>
    %c0_11 = arith.constant 0 : index
    %c0_12 = arith.constant 0 : index
    %18 = vector.load %arg10[%c0_11, %c0_12] : memref<1x64xf32, #tpu.memory_space<vmem>>, vector<1x64xf32>
    %19 = vector.broadcast %18 : vector<1x64xf32> to vector<128x64xf32>
    %20 = arith.mulf %17, %19 : vector<128x64xf32>
    %c0_13 = arith.constant 0 : index
    %c0_14 = arith.constant 0 : index
    %21 = vector.load %arg11[%c0_13, %c0_14] : memref<1x64xf32, #tpu.memory_space<vmem>>, vector<1x64xf32>
    %22 = vector.broadcast %21 : vector<1x64xf32> to vector<128x64xf32>
    %23 = arith.addf %20, %22 : vector<128x64xf32>
    %24 = arith.truncf %23 : vector<128x64xf32> to vector<128x64xbf16>
    %cst_15 = arith.constant 0.000000e+00 : f32
    %25 = vector.broadcast %cst_15 : f32 to vector<128x256xf32>
    %c0_i32_16 = arith.constant 0 : i32
    %c32_i32_17 = arith.constant 32 : i32
    %26 = arith.addi %c0_i32_16, %c32_i32_17 : i32
    %c1_i32_18 = arith.constant 1 : i32
    %27 = scf.for %arg22 = %c0_i32_16 to %26 step %c1_i32_18 iter_args(%arg23 = %25) -> (vector<128x256xf32>)  : i32 {
      %79 = arith.index_cast %arg22 : i32 to index
      %c0_51 = arith.constant 0 : index
      %c0_52 = arith.constant 0 : index
      %80 = vector.load %arg1[%79, %c0_51, %c0_52] : memref<32x8x1xi32, #tpu.memory_space<vmem>>, vector<1x8x1xi32>
      %81 = vector.shape_cast %80 : vector<1x8x1xi32> to vector<8x1xi32>
      %82 = arith.index_cast %arg22 : i32 to index
      %c0_53 = arith.constant 0 : index
      %c0_54 = arith.constant 0 : index
      %83 = vector.load %arg2[%82, %c0_53, %c0_54] : memref<32x1x8xi32, #tpu.memory_space<vmem>>, vector<1x1x8xi32>
      %84 = vector.shape_cast %83 : vector<1x1x8xi32> to vector<1x8xi32>
      %85 = arith.index_cast %arg22 : i32 to index
      %c0_55 = arith.constant 0 : index
      %c0_56 = arith.constant 0 : index
      %86 = vector.load %arg3[%85, %c0_55, %c0_56] : memref<32x1x8xf32, #tpu.memory_space<vmem>>, vector<1x1x8xf32>
      %87 = vector.shape_cast %86 : vector<1x1x8xf32> to vector<1x8xf32>
      %88 = tpu.iota {dimensions = array<i32: 1>} : vector<8x128xi32>
      %89 = vector.broadcast %81 : vector<8x1xi32> to vector<8x128xi32>
      %90 = arith.cmpi eq, %89, %88 : vector<8x128xi32>
      %91 = arith.extui %90 : vector<8x128xi1> to vector<8x128xi32>
      %92 = arith.sitofp %91 : vector<8x128xi32> to vector<8x128xf32>
      %93 = tpu.iota {dimensions = array<i32: 0>} : vector<128x8xi32>
      %94 = vector.broadcast %84 : vector<1x8xi32> to vector<128x8xi32>
      %95 = arith.cmpi eq, %93, %94 : vector<128x8xi32>
      %96 = arith.extui %95 : vector<128x8xi1> to vector<128x8xi32>
      %97 = arith.sitofp %96 : vector<128x8xi32> to vector<128x8xf32>
      %98 = vector.broadcast %87 : vector<1x8xf32> to vector<128x8xf32>
      %99 = arith.mulf %97, %98 : vector<128x8xf32>
      %cst_57 = arith.constant dense<0.000000e+00> : vector<8x64xf32>
      %100 = tpu.matmul %92, %23, %cst_57 {dimension_numbers = #tpu.dot_dimension_numbers<[1], [0], [0], [1], [0, 0, 1, 1], [], []>} : vector<8x128xf32>, vector<128x64xf32>, vector<8x64xf32> -> vector<8x64xf32>
      %101 = arith.truncf %100 : vector<8x64xf32> to vector<8x64xbf16>
      %102 = arith.index_cast %arg22 : i32 to index
      %c0_58 = arith.constant 0 : index
      %c0_59 = arith.constant 0 : index
      %103 = vector.load %arg12[%102, %c0_58, %c0_59] : memref<32x64x256xbf16, #tpu.memory_space<vmem>>, vector<1x64x256xbf16>
      %104 = vector.shape_cast %103 : vector<1x64x256xbf16> to vector<64x256xbf16>
      %cst_60 = arith.constant dense<0.000000e+00> : vector<8x256xf32>
      %105 = tpu.matmul %101, %104, %cst_60 {dimension_numbers = #tpu.dot_dimension_numbers<[1], [0], [0], [1], [0, 0, 1, 1], [], []>} : vector<8x64xbf16>, vector<64x256xbf16>, vector<8x256xf32> -> vector<8x256xf32>
      %cst_61 = arith.constant dense<0.000000e+00> : vector<128x256xf32>
      %106 = tpu.matmul %99, %105, %cst_61 {dimension_numbers = #tpu.dot_dimension_numbers<[1], [0], [0], [1], [0, 0, 1, 1], [], []>} : vector<128x8xf32>, vector<8x256xf32>, vector<128x256xf32> -> vector<128x256xf32>
      %107 = arith.addf %arg23, %106 : vector<128x256xf32>
      scf.yield %107 : vector<128x256xf32>
    }
    %c32_i32_19 = arith.constant 32 : i32
    %c0_20 = arith.constant 0 : index
    %c0_21 = arith.constant 0 : index
    %28 = vector.load %arg14[%c0_20, %c0_21] : memref<1x256xf32, #tpu.memory_space<vmem>>, vector<1x256xf32>
    %29 = vector.broadcast %28 : vector<1x256xf32> to vector<128x256xf32>
    %30 = arith.addf %27, %29 : vector<128x256xf32>
    %cst_22 = arith.constant 0.000000e+00 : f32
    %31 = vector.broadcast %cst_22 : f32 to vector<128x256xf32>
    %32 = arith.maximumf %30, %31 : vector<128x256xf32>
    %c0_23 = arith.constant 0 : index
    %c0_24 = arith.constant 0 : index
    %33 = vector.load %arg13[%c0_23, %c0_24] : memref<64x256xbf16, #tpu.memory_space<vmem>>, vector<64x256xbf16>
    %cst_25 = arith.constant dense<0.000000e+00> : vector<128x256xf32>
    %34 = tpu.matmul %24, %33, %cst_25 {dimension_numbers = #tpu.dot_dimension_numbers<[1], [0], [0], [1], [0, 0, 1, 1], [], []>} : vector<128x64xbf16>, vector<64x256xbf16>, vector<128x256xf32> -> vector<128x256xf32>
    %c0_26 = arith.constant 0 : index
    %c0_27 = arith.constant 0 : index
    %35 = vector.load %arg15[%c0_26, %c0_27] : memref<1x256xf32, #tpu.memory_space<vmem>>, vector<1x256xf32>
    %36 = vector.broadcast %35 : vector<1x256xf32> to vector<128x256xf32>
    %37 = arith.addf %34, %36 : vector<128x256xf32>
    %cst_28 = arith.constant 0.000000e+00 : f32
    %38 = vector.broadcast %cst_28 : f32 to vector<128x256xf32>
    %39 = arith.maximumf %37, %38 : vector<128x256xf32>
    %40 = arith.addf %32, %39 : vector<128x256xf32>
    %c0_29 = arith.constant 0 : index
    %c0_30 = arith.constant 0 : index
    %41 = vector.load %arg16[%c0_29, %c0_30] : memref<1x256xf32, #tpu.memory_space<vmem>>, vector<1x256xf32>
    %42 = vector.broadcast %41 : vector<1x256xf32> to vector<128x256xf32>
    %43 = arith.mulf %40, %42 : vector<128x256xf32>
    %c0_31 = arith.constant 0 : index
    %c0_32 = arith.constant 0 : index
    %44 = vector.load %arg17[%c0_31, %c0_32] : memref<1x256xf32, #tpu.memory_space<vmem>>, vector<1x256xf32>
    %45 = vector.broadcast %44 : vector<1x256xf32> to vector<128x256xf32>
    %46 = arith.addf %43, %45 : vector<128x256xf32>
    %c0_33 = arith.constant 0 : index
    %c0_34 = arith.constant 0 : index
    %47 = vector.load %arg18[%c0_33, %c0_34] : memref<1x256xf32, #tpu.memory_space<vmem>>, vector<1x256xf32>
    %cst_35 = arith.constant dense<0.000000e+00> : vector<1x128xf32>
    %48 = tpu.matmul %47, %46, %cst_35 {dimension_numbers = #tpu.dot_dimension_numbers<[1], [1], [0], [0], [0, 0, 1, 0], [], []>} : vector<1x256xf32>, vector<128x256xf32>, vector<1x128xf32> -> vector<1x128xf32>
    %c0_36 = arith.constant 0 : index
    %c0_37 = arith.constant 0 : index
    %49 = vector.load %arg19[%c0_36, %c0_37] : memref<1x1xf32, #tpu.memory_space<vmem>>, vector<1x1xf32>
    %50 = vector.broadcast %49 : vector<1x1xf32> to vector<1x128xf32>
    %51 = arith.addf %48, %50 : vector<1x128xf32>
    %52 = tpu.iota {dimensions = array<i32: 0>} : vector<2x128xi32>
    %c0_38 = arith.constant 0 : index
    %c0_39 = arith.constant 0 : index
    %53 = vector.load %arg4[%c0_38, %c0_39] : memref<1x128xi32, #tpu.memory_space<vmem>>, vector<1x128xi32>
    %54 = vector.broadcast %53 : vector<1x128xi32> to vector<2x128xi32>
    %55 = arith.cmpi eq, %52, %54 : vector<2x128xi32>
    %cst_40 = arith.constant -1.000000e+30 : f32
    %56 = vector.shape_cast %51 : vector<1x128xf32> to vector<1x128xf32>
    %57 = vector.broadcast %56 : vector<1x128xf32> to vector<2x128xf32>
    %58 = vector.broadcast %cst_40 : f32 to vector<2x128xf32>
    %59 = arith.select %55, %57, %58 : vector<2x128xi1>, vector<2x128xf32>
    %cst_41 = arith.constant dense<0xFF800000> : vector<2xf32>
    %60 = vector.multi_reduction <maximumf>, %59, %cst_41 [1] : vector<2x128xf32> to vector<2xf32>
    %61 = vector.shape_cast %60 : vector<2xf32> to vector<2x1xf32>
    %62 = vector.broadcast %51 : vector<1x128xf32> to vector<2x128xf32>
    %63 = vector.broadcast %61 : vector<2x1xf32> to vector<2x128xf32>
    %64 = arith.subf %62, %63 : vector<2x128xf32>
    %65 = math.exp %64 : vector<2x128xf32>
    %cst_42 = arith.constant 0.000000e+00 : f32
    %66 = vector.broadcast %cst_42 : f32 to vector<2x128xf32>
    %67 = arith.select %55, %65, %66 : vector<2x128xi1>, vector<2x128xf32>
    %cst_43 = arith.constant dense<0.000000e+00> : vector<2xf32>
    %68 = vector.multi_reduction <add>, %67, %cst_43 [1] : vector<2x128xf32> to vector<2xf32>
    %69 = vector.shape_cast %68 : vector<2xf32> to vector<2x1xf32>
    %cst_44 = arith.constant 1.000000e-30 : f32
    %70 = vector.broadcast %cst_44 : f32 to vector<2x1xf32>
    %71 = arith.maximumf %69, %70 : vector<2x1xf32>
    %72 = vector.broadcast %71 : vector<2x1xf32> to vector<2x128xf32>
    %73 = arith.divf %67, %72 : vector<2x128xf32>
    %cst_45 = arith.constant dense<0.000000e+00> : vector<2x256xf32>
    %74 = tpu.matmul %73, %46, %cst_45 {dimension_numbers = #tpu.dot_dimension_numbers<[1], [0], [0], [1], [0, 0, 1, 1], [], []>} : vector<2x128xf32>, vector<128x256xf32>, vector<2x256xf32> -> vector<2x256xf32>
    %c0_46 = arith.constant 0 : index
    %c0_47 = arith.constant 0 : index
    %75 = vector.load %arg20[%c0_46, %c0_47] : memref<2x256xf32, #tpu.memory_space<vmem>>, vector<2x256xf32>
    tpu.vector_store %arg20[%c0_46, %c0_47], %74 {strides = array<i32>} : memref<2x256xf32, #tpu.memory_space<vmem>>, vector<2x256xf32>,
    %cst_48 = arith.constant dense<0.000000e+00> : vector<128xf32>
    %76 = vector.multi_reduction <add>, %73, %cst_48 [0] : vector<2x128xf32> to vector<128xf32>
    %77 = vector.shape_cast %76 : vector<128xf32> to vector<1x128xf32>
    %c0_49 = arith.constant 0 : index
    %c0_50 = arith.constant 0 : index
    %78 = vector.load %arg21[%c0_49, %c0_50] : memref<1x128xf32, #tpu.memory_space<vmem>>, vector<1x128xf32>
    tpu.vector_store %arg21[%c0_49, %c0_50], %77 {strides = array<i32>} : memref<1x128xf32, #tpu.memory_space<vmem>>, vector<1x128xf32>,
    return
  }
  func.func @transform_0(%arg0: i32) -> (i32, i32, i32) {
    %c0_i32 = arith.constant 0 : i32
    %c0_i32_0 = arith.constant 0 : i32
    %c0_i32_1 = arith.constant 0 : i32
    %c0_i32_2 = arith.constant 0 : i32
    return %c0_i32, %c0_i32_0, %c0_i32_1 : i32, i32, i32
  }
  func.func @transform_1(%arg0: i32) -> (i32, i32, i32) {
    %c0_i32 = arith.constant 0 : i32
    %c0_i32_0 = arith.constant 0 : i32
    %c0_i32_1 = arith.constant 0 : i32
    %c0_i32_2 = arith.constant 0 : i32
    return %c0_i32, %c0_i32_0, %c0_i32_1 : i32, i32, i32
  }
  func.func @transform_2(%arg0: i32) -> (i32, i32, i32) {
    %c0_i32 = arith.constant 0 : i32
    %c0_i32_0 = arith.constant 0 : i32
    %c0_i32_1 = arith.constant 0 : i32
    %c0_i32_2 = arith.constant 0 : i32
    return %c0_i32, %c0_i32_0, %c0_i32_1 : i32, i32, i32
  }
  func.func @transform_3(%arg0: i32) -> (i32, i32) {
    %c0_i32 = arith.constant 0 : i32
    %c0_i32_0 = arith.constant 0 : i32
    %c0_i32_1 = arith.constant 0 : i32
    return %c0_i32, %c0_i32_0 : i32, i32
  }
  func.func @transform_4(%arg0: i32) -> (i32, i32) {
    %c0_i32 = arith.constant 0 : i32
    %c0_i32_0 = arith.constant 0 : i32
    %c0_i32_1 = arith.constant 0 : i32
    return %c0_i32, %c0_i32_0 : i32, i32
  }
  func.func @transform_5(%arg0: i32) -> (i32, i32, i32) {
    %c0_i32 = arith.constant 0 : i32
    %c0_i32_0 = arith.constant 0 : i32
    %c0_i32_1 = arith.constant 0 : i32
    %c0_i32_2 = arith.constant 0 : i32
    return %c0_i32, %c0_i32_0, %c0_i32_1 : i32, i32, i32
  }
  func.func @transform_6(%arg0: i32) -> (i32, i32) {
    %c0_i32 = arith.constant 0 : i32
    %c0_i32_0 = arith.constant 0 : i32
    %c0_i32_1 = arith.constant 0 : i32
    return %c0_i32, %c0_i32_0 : i32, i32
  }
  func.func @transform_7(%arg0: i32) -> (i32, i32) {
    %c0_i32 = arith.constant 0 : i32
    %c0_i32_0 = arith.constant 0 : i32
    %c0_i32_1 = arith.constant 0 : i32
    return %c0_i32, %c0_i32_0 : i32, i32
  }
  func.func @transform_8(%arg0: i32) -> (i32, i32) {
    %c0_i32 = arith.constant 0 : i32
    %c0_i32_0 = arith.constant 0 : i32
    %c0_i32_1 = arith.constant 0 : i32
    return %c0_i32, %c0_i32_0 : i32, i32
  }
  func.func @transform_9(%arg0: i32) -> (i32, i32) {
    %c0_i32 = arith.constant 0 : i32
    %c0_i32_0 = arith.constant 0 : i32
    %c0_i32_1 = arith.constant 0 : i32
    return %c0_i32, %c0_i32_0 : i32, i32
  }
  func.func @transform_10(%arg0: i32) -> (i32, i32) {
    %c0_i32 = arith.constant 0 : i32
    %c0_i32_0 = arith.constant 0 : i32
    %c0_i32_1 = arith.constant 0 : i32
    return %c0_i32, %c0_i32_0 : i32, i32
  }
  func.func @transform_11(%arg0: i32) -> (i32, i32, i32) {
    %c0_i32 = arith.constant 0 : i32
    %c0_i32_0 = arith.constant 0 : i32
    %c0_i32_1 = arith.constant 0 : i32
    %c0_i32_2 = arith.constant 0 : i32
    return %c0_i32, %c0_i32_0, %c0_i32_1 : i32, i32, i32
  }
  func.func @transform_12(%arg0: i32) -> (i32, i32) {
    %c0_i32 = arith.constant 0 : i32
    %c0_i32_0 = arith.constant 0 : i32
    %c0_i32_1 = arith.constant 0 : i32
    return %c0_i32, %c0_i32_0 : i32, i32
  }
  func.func @transform_13(%arg0: i32) -> (i32, i32) {
    %c0_i32 = arith.constant 0 : i32
    %c0_i32_0 = arith.constant 0 : i32
    %c0_i32_1 = arith.constant 0 : i32
    return %c0_i32, %c0_i32_0 : i32, i32
  }
  func.func @transform_14(%arg0: i32) -> (i32, i32) {
    %c0_i32 = arith.constant 0 : i32
    %c0_i32_0 = arith.constant 0 : i32
    %c0_i32_1 = arith.constant 0 : i32
    return %c0_i32, %c0_i32_0 : i32, i32
  }
  func.func @transform_15(%arg0: i32) -> (i32, i32) {
    %c0_i32 = arith.constant 0 : i32
    %c0_i32_0 = arith.constant 0 : i32
    %c0_i32_1 = arith.constant 0 : i32
    return %c0_i32, %c0_i32_0 : i32, i32
  }
  func.func @transform_16(%arg0: i32) -> (i32, i32) {
    %c0_i32 = arith.constant 0 : i32
    %c0_i32_0 = arith.constant 0 : i32
    %c0_i32_1 = arith.constant 0 : i32
    return %c0_i32, %c0_i32_0 : i32, i32
  }
  func.func @transform_17(%arg0: i32) -> (i32, i32) {
    %c0_i32 = arith.constant 0 : i32
    %c0_i32_0 = arith.constant 0 : i32
    %c0_i32_1 = arith.constant 0 : i32
    return %c0_i32, %c0_i32_0 : i32, i32
  }
  func.func @transform_18(%arg0: i32) -> (i32, i32) {
    %c0_i32 = arith.constant 0 : i32
    %c0_i32_0 = arith.constant 0 : i32
    %c0_i32_1 = arith.constant 0 : i32
    return %c0_i32, %c0_i32_0 : i32, i32
  }
  func.func @transform_19(%arg0: i32) -> (i32, i32) {
    %c0_i32 = arith.constant 0 : i32
    %c0_i32_0 = arith.constant 0 : i32
    %c0_i32_1 = arith.constant 0 : i32
    return %c0_i32, %c0_i32_0 : i32, i32
  }
  func.func @transform_20(%arg0: i32) -> (i32, i32) {
    %c0_i32 = arith.constant 0 : i32
    %c0_i32_0 = arith.constant 0 : i32
    %c0_i32_1 = arith.constant 0 : i32
    return %c0_i32, %c0_i32_0 : i32, i32
  }
}

</mosaic_0001>

<llo_original>
// kernel: tpu_custom_call.1
$region0: #{tpu_custom_call.1}
  #allocation0 [shape = 'u32[]', space=smem, size = 0x4, offset = 0x4, fixed_abs, tag = 'smem constant byte address 0x4 - core index']
  #allocation1 [shape = 'u32[144,128]{1,0:T(1,128)}', space=vmem, size = 0x12000, scoped, tag = 'internal scratch']
  #allocation2 [shape = 'f32[1,1]{1,0:T(1,128)S(1)}', space=vmem, size = 0x200, scoped, tag = 'scoped memory for tpu_custom_call.1']
  %s0 = inlined_call_operand.vmem [shape: s32[32,8,1], index: 0, kind: input, shape index: {}]
  %s1 = inlined_call_operand.vmem [shape: s32[32,1,8], index: 1, kind: input, shape index: {}]
  %s2 = inlined_call_operand.vmem [shape: f32[32,1,8], index: 2, kind: input, shape index: {}]
  %s3 = inlined_call_operand.vmem [shape: s32[1,128], index: 3, kind: input, shape index: {}]
  %s4 = inlined_call_operand.vmem [shape: f32[128,32], index: 4, kind: input, shape index: {}]
  %s5 = inlined_call_operand.vmem [shape: bf16[32,32,64], index: 5, kind: input, shape index: {}]
  %s6 = inlined_call_operand.hbm [shape: bf16[32,64], index: 6, kind: input, shape index: {}]
  %s7 = inlined_call_operand.vmem [shape: f32[1,64], index: 7, kind: input, shape index: {}]
  %s8 = inlined_call_operand.vmem [shape: f32[1,64], index: 8, kind: input, shape index: {}]
  %s9 = inlined_call_operand.vmem [shape: f32[1,64], index: 9, kind: input, shape index: {}]
  %s10 = inlined_call_operand.vmem [shape: f32[1,64], index: 10, kind: input, shape index: {}]
  %s11 = inlined_call_operand.hbm [shape: bf16[32,64,256], index: 11, kind: input, shape index: {}]
  %s12 = inlined_call_operand.hbm [shape: bf16[64,256], index: 12, kind: input, shape index: {}]
  %s13 = inlined_call_operand.vmem [shape: f32[1,256], index: 13, kind: input, shape index: {}]
  %s14 = inlined_call_operand.vmem [shape: f32[1,256], index: 14, kind: input, shape index: {}]
  %s15 = inlined_call_operand.vmem [shape: f32[1,256], index: 15, kind: input, shape index: {}]
  %s16 = inlined_call_operand.vmem [shape: f32[1,256], index: 16, kind: input, shape index: {}]
  %s17 = inlined_call_operand.vmem [shape: f32[1,256], index: 17, kind: input, shape index: {}]
  %s18 = inlined_call_operand.<no memory space> [shape: f32[1,1], index: 18, kind: input, shape index: {}]
  %s19 = inlined_call_operand.hbm [shape: f32[2,256], index: 19, kind: output, shape index: {0}]
  %s20 = inlined_call_operand.hbm [shape: f32[1,128], index: 20, kind: output, shape index: {1}]
  %21 = xla_tuple %s19, %s20
  %s22 = sld [smem:[#allocation0]]
  $region120: #{tpu_custom_call.1} parent=0
    _
  %s24 = ssub.s32 1, %s22
  %s25 = scalar_select 0, %s24, %s22
  %v26 = vstv %s18
  %27 = vst [vmem:[#allocation2] sm:$0x1] %v26
  $region1: #{tpu_custom_call.1} parent=0
    #allocation3 [shape = 'u8[8192]{0}', space=vmem, size = 0x2000, scoped, tag = 'input window, operand 6, single buffered']
    #allocation4 [shape = 's32[1]{0}', space=sflag, size = 0x4, scoped, tag = 'scoped memory for tpu_custom_call.1']
    #allocation5 [shape = 's32[1]{0}', space=sflag, size = 0x4, scoped, tag = 'scoped memory for tpu_custom_call.1']
    #allocation6 [shape = 'u8[1048576]{0}', space=vmem, size = 0x100000, scoped, tag = 'input window, operand 11, single buffered']
    #allocation7 [shape = 's32[1]{0}', space=sflag, size = 0x4, scoped, tag = 'scoped memory for tpu_custom_call.1']
    #allocation8 [shape = 'u8[32768]{0}', space=vmem, size = 0x8000, scoped, tag = 'input window, operand 12, single buffered']
    #allocation9 [shape = 'u8[2048]{0}', space=vmem, size = 0x800, scoped, tag = 'output window, operand 0, single buffered']
    #allocation10 [shape = 'u8[512]{0}', space=vmem, size = 0x400, scoped, tag = 'output window, operand 1, single buffered']
    #allocation11 [shape = 's32[1]{0}', space=sflag, size = 0x4, scoped, tag = 'scoped memory for tpu_custom_call.1']
    %28 = vsyncpa [#allocation4], 0
    %29 = vsyncpa [#allocation7], 0
    %30 = vsyncpa [#allocation5], 0
    %31 = vsyncpa [#allocation11], 0
    // Predicated region
    $region2: #{tpu_custom_call.1} parent=1 // pred_check
      _
    $region3: #{tpu_custom_call.1} parent=1 // pred_check_branch
      %33 = sbr.rel (0) target = $region5
    $region4: #{tpu_custom_call.1} parent=1 // pred_region
      _
    $region5: #{tpu_custom_call.1} parent=1 // pred_fallthru
      _
    // Predicated region
    $region6: #{tpu_custom_call.1} parent=1 // pred_check
      _
    $region7: #{tpu_custom_call.1} parent=1 // pred_check_branch
      %35 = sbr.rel (0) target = $region9
    $region8: #{tpu_custom_call.1} parent=1 // pred_region
      _
    $region9: #{tpu_custom_call.1} parent=1 // pred_fallthru
      _
    // Predicated region
    $region10: #{tpu_custom_call.1} parent=1 // pred_check
      _
    $region11: #{tpu_custom_call.1} parent=1 // pred_check_branch
      %37 = sbr.rel (0) target = $region13
    $region12: #{tpu_custom_call.1} parent=1 // pred_region
      _
    $region13: #{tpu_custom_call.1} parent=1 // pred_fallthru
      _
    // Predicated region
    $region14: #{tpu_custom_call.1} parent=1 // pred_check
      _
    $region15: #{tpu_custom_call.1} parent=1 // pred_check_branch
      %39 = sbr.rel (0) target = $region17
    $region16: #{tpu_custom_call.1} parent=1 // pred_region
      _
    $region17: #{tpu_custom_call.1} parent=1 // pred_fallthru
      _
    // Predicated region
    $region18: #{tpu_custom_call.1} parent=1 // pred_check
      _
    $region19: #{tpu_custom_call.1} parent=1 // pred_check_branch
      %41 = sbr.rel (0) target = $region21
    $region20: #{tpu_custom_call.1} parent=1 // pred_region
      _
    $region21: #{tpu_custom_call.1} parent=1 // pred_fallthru
      _
    // Predicated region
    $region22: #{tpu_custom_call.1} parent=1 // pred_check
      _
    $region23: #{tpu_custom_call.1} parent=1 // pred_check_branch
      %43 = sbr.rel (0) target = $region25
    $region24: #{tpu_custom_call.1} parent=1 // pred_region
      _
    $region25: #{tpu_custom_call.1} parent=1 // pred_fallthru
      _
    // Predicated region
    $region26: #{tpu_custom_call.1} parent=1 // pred_check
      _
    $region27: #{tpu_custom_call.1} parent=1 // pred_check_branch
      %45 = sbr.rel (0) target = $region29
    $region28: #{tpu_custom_call.1} parent=1 // pred_region
      %s47 = ssub.s32 256, 256
      %48 = vsyncadd [#allocation4], %s47
      %s49 = sshll.u32 [#allocation3], 4
      %s50 = int_to_ptr.vmem [resolvable:$true] %s49
      %55 = dma.hbm_to_vmem [thread:$0]  %s6, 256, %s50, [#allocation4], 64, 64, 4
    $region29: #{tpu_custom_call.1} parent=1 // pred_fallthru
      _
    // Predicated region
    $region30: #{tpu_custom_call.1} parent=1 // pred_check
      _
    $region31: #{tpu_custom_call.1} parent=1 // pred_check_branch
      %57 = sbr.rel (0) target = $region33
    $region32: #{tpu_custom_call.1} parent=1 // pred_region
      _
    $region33: #{tpu_custom_call.1} parent=1 // pred_fallthru
      _
    // Predicated region
    $region34: #{tpu_custom_call.1} parent=1 // pred_check
      _
    $region35: #{tpu_custom_call.1} parent=1 // pred_check_branch
      %59 = sbr.rel (0) target = $region37
    $region36: #{tpu_custom_call.1} parent=1 // pred_region
      _
    $region37: #{tpu_custom_call.1} parent=1 // pred_fallthru
      _
    // Predicated region
    $region38: #{tpu_custom_call.1} parent=1 // pred_check
      _
    $region39: #{tpu_custom_call.1} parent=1 // pred_check_branch
      %61 = sbr.rel (0) target = $region41
    $region40: #{tpu_custom_call.1} parent=1 // pred_region
      _
    $region41: #{tpu_custom_call.1} parent=1 // pred_fallthru
      _
    // Predicated region
    $region42: #{tpu_custom_call.1} parent=1 // pred_check
      _
    $region43: #{tpu_custom_call.1} parent=1 // pred_check_branch
      %63 = sbr.rel (0) target = $region45
    $region44: #{tpu_custom_call.1} parent=1 // pred_region
      _
    $region45: #{tpu_custom_call.1} parent=1 // pred_fallthru
      _
    // Predicated region
    $region46: #{tpu_custom_call.1} parent=1 // pred_check
      _
    $region47: #{tpu_custom_call.1} parent=1 // pred_check_branch
      %65 = sbr.rel (0) target = $region49
    $region48: #{tpu_custom_call.1} parent=1 // pred_region
      %s67 = ssub.s32 32768, 32768
      %68 = vsyncadd [#allocation7], %s67
      %s69 = sshll.u32 [#allocation6], 4
      %s70 = int_to_ptr.vmem [resolvable:$true] %s69
      %75 = dma.hbm_to_vmem [thread:$0]  %s11, 32768, %s70, [#allocation7], 128, 128, 8
    $region49: #{tpu_custom_call.1} parent=1 // pred_fallthru
      _
    // Predicated region
    $region50: #{tpu_custom_call.1} parent=1 // pred_check
      _
    $region51: #{tpu_custom_call.1} parent=1 // pred_check_branch
      %77 = sbr.rel (0) target = $region53
    $region52: #{tpu_custom_call.1} parent=1 // pred_region
      %s79 = ssub.s32 1024, 1024
      %80 = vsyncadd [#allocation7], %s79
      %s81 = sshll.u32 [#allocation8], 4
      %s82 = int_to_ptr.vmem [resolvable:$true] %s81
      %87 = dma.hbm_to_vmem [thread:$0]  %s12, 1024, %s82, [#allocation7], 128, 128, 8
    $region53: #{tpu_custom_call.1} parent=1 // pred_fallthru
      _
    // Predicated region
    $region54: #{tpu_custom_call.1} parent=1 // pred_check
      _
    $region55: #{tpu_custom_call.1} parent=1 // pred_check_branch
      %89 = sbr.rel (0) target = $region57
    $region56: #{tpu_custom_call.1} parent=1 // pred_region
      _
    $region57: #{tpu_custom_call.1} parent=1 // pred_fallthru
      _
    // Predicated region
    $region58: #{tpu_custom_call.1} parent=1 // pred_check
      _
    $region59: #{tpu_custom_call.1} parent=1 // pred_check_branch
      %91 = sbr.rel (0) target = $region61
    $region60: #{tpu_custom_call.1} parent=1 // pred_region
      _
    $region61: #{tpu_custom_call.1} parent=1 // pred_fallthru
      _
    // Predicated region
    $region62: #{tpu_custom_call.1} parent=1 // pred_check
      _
    $region63: #{tpu_custom_call.1} parent=1 // pred_check_branch
      %93 = sbr.rel (0) target = $region65
    $region64: #{tpu_custom_call.1} parent=1 // pred_region
      _
    $region65: #{tpu_custom_call.1} parent=1 // pred_fallthru
      _
    // Predicated region
    $region66: #{tpu_custom_call.1} parent=1 // pred_check
      _
    $region67: #{tpu_custom_call.1} parent=1 // pred_check_branch
      %95 = sbr.rel (0) target = $region69
    $region68: #{tpu_custom_call.1} parent=1 // pred_region
      _
    $region69: #{tpu_custom_call.1} parent=1 // pred_fallthru
      _
    // Predicated region
    $region70: #{tpu_custom_call.1} parent=1 // pred_check
      _
    $region71: #{tpu_custom_call.1} parent=1 // pred_check_branch
      %97 = sbr.rel (0) target = $region73
    $region72: #{tpu_custom_call.1} parent=1 // pred_region
      _
    $region73: #{tpu_custom_call.1} parent=1 // pred_fallthru
      _
    // Predicated region
    $region74: #{tpu_custom_call.1} parent=1 // pred_check
      _
    $region75: #{tpu_custom_call.1} parent=1 // pred_check_branch
      %99 = sbr.rel (0) target = $region77
    $region76: #{tpu_custom_call.1} parent=1 // pred_region
      _
    $region77: #{tpu_custom_call.1} parent=1 // pred_fallthru
      _
    // Predicated region
    $region78: #{tpu_custom_call.1} parent=1 // pred_check
      _
    $region79: #{tpu_custom_call.1} parent=1 // pred_check_branch
      %101 = sbr.rel (0) target = $region81
    $region80: #{tpu_custom_call.1} parent=1 // pred_region
      %102 = dma.done [#allocation4], 256
    $region81: #{tpu_custom_call.1} parent=1 // pred_fallthru
      _
    // Predicated region
    $region82: #{tpu_custom_call.1} parent=1 // pred_check
      _
    $region83: #{tpu_custom_call.1} parent=1 // pred_check_branch
      %104 = sbr.rel (0) target = $region85
    $region84: #{tpu_custom_call.1} parent=1 // pred_region
      %105 = dma.done [#allocation7], 32768
    $region85: #{tpu_custom_call.1} parent=1 // pred_fallthru
      _
    // Predicated region
    $region86: #{tpu_custom_call.1} parent=1 // pred_check
      _
    $region87: #{tpu_custom_call.1} parent=1 // pred_check_branch
      %107 = sbr.rel (0) target = $region89
    $region88: #{tpu_custom_call.1} parent=1 // pred_region
      %108 = dma.done [#allocation7], 1024
    $region89: #{tpu_custom_call.1} parent=1 // pred_fallthru
      _
    %v110 = vld [vmem:[%s4] sm:$0xff]
    %v111 = vld [vmem:[%s4 + $0x8] sm:$0xff]
    %v112 = vld [vmem:[%s4 + $0x10] sm:$0xff]
    %v113 = vld [vmem:[%s4 + $0x18] sm:$0xff]
    %v114 = vld [vmem:[%s4 + $0x20] sm:$0xff]
    %v115 = vld [vmem:[%s4 + $0x28] sm:$0xff]
    %v116 = vld [vmem:[%s4 + $0x30] sm:$0xff]
    %v117 = vld [vmem:[%s4 + $0x38] sm:$0xff]
    %v118 = vld [vmem:[%s4 + $0x40] sm:$0xff]
    %v119 = vld [vmem:[%s4 + $0x48] sm:$0xff]
    %v120 = vld [vmem:[%s4 + $0x50] sm:$0xff]
    %v121 = vld [vmem:[%s4 + $0x58] sm:$0xff]
    %v122 = vld [vmem:[%s4 + $0x60] sm:$0xff]
    %v123 = vld [vmem:[%s4 + $0x68] sm:$0xff]
    %v124 = vld [vmem:[%s4 + $0x70] sm:$0xff]
    %v125 = vld [vmem:[%s4 + $0x78] sm:$0xff]
    %v126 = vpack.c.bf16 %v111, %v110
    %v127 = vpack.c.bf16 %v113, %v112
    %v128 = vpack.c.bf16 %v115, %v114
    %v129 = vpack.c.bf16 %v117, %v116
    %v130 = vpack.c.bf16 %v119, %v118
    %v131 = vpack.c.bf16 %v121, %v120
    %v132 = vpack.c.bf16 %v123, %v122
    %v133 = vpack.c.bf16 %v125, %v124
    loop: start=0, step=1, limit=32
    $region90: #{tpu_custom_call.1} parent=1 // loop_pre_header
      _
    $region91: #{tpu_custom_call.1} parent=1 // loop_header
      %s135 = sphi 0, %s139
      %p136 = scmp.ge.s32.totalorder %s135, 32
      %v140 = vphi 0.0, %v590
      %v141 = vphi 0.0, %v591
      %v142 = vphi 0.0, %v592
      %v143 = vphi 0.0, %v593
      %v144 = vphi 0.0, %v594
      %v145 = vphi 0.0, %v595
      %v146 = vphi 0.0, %v596
      %v147 = vphi 0.0, %v597
      %v148 = vphi 0.0, %v598
      %v149 = vphi 0.0, %v599
      %v150 = vphi 0.0, %v600
      %v151 = vphi 0.0, %v601
      %v152 = vphi 0.0, %v602
      %v153 = vphi 0.0, %v603
      %v154 = vphi 0.0, %v604
      %v155 = vphi 0.0, %v605
    $region92: #{tpu_custom_call.1} parent=1 // loop_header_branch
      %138 = sbr.rel (%p136) target = $region96
    $region93: #{tpu_custom_call.1} parent=1 // loop_body
      %s156 = smul.u32 %s135, 8
      %s157 = scalar_lea.vmem %s0, %s156
      %v158 = vld [vmem:[%s157] sm:$0xff]
      %s159 = scalar_lea.vmem %s1, %s135
      %v160 = vld [vmem:[%s159] sm:$0x1]
      %s161 = scalar_lea.vmem %s2, %s135
      %v162 = vld [vmem:[%s161] sm:$0x1]
      %v163 = vlaneseq
      %v164 = vand.u32 %v163, 127
      %165 = vset.pattern.permute.xlu0 0
      %166 = vperm.xlu0 %165, %v158
      %v167 = vpop.permute.xlu0 %166
      %vm168 = vcmp.eq.s32.totalorder %v167, %v164
      %v169 = vsel %vm168, 1, 0
      %v170 = vcvt.s32.f32 %v169
      %v171 = vlaneseq
      %v172 = vshrl.u32 %v171, 7
      %v173 = vadd.s32 %v172, 8
      %v174 = vadd.s32 %v172, 16
      %v175 = vadd.s32 %v172, 24
      %v176 = vadd.s32 %v172, 32
      %v177 = vadd.s32 %v172, 40
      %v178 = vadd.s32 %v172, 48
      %v179 = vadd.s32 %v172, 56
      %v180 = vadd.s32 %v172, 64
      %v181 = vadd.s32 %v172, 72
      %v182 = vadd.s32 %v172, 80
      %v183 = vadd.s32 %v172, 88
      %v184 = vadd.s32 %v172, 96
      %v185 = vadd.s32 %v172, 104
      %v186 = vadd.s32 %v172, 112
      %v187 = vadd.s32 %v172, 120
      %v188 = vlaneseq
      %v189 = vshrl.u32 %v188, 7
      %v190 = vsub.s32 0, %v189
      %v191 = vrot.slane %v160, %v190
      %vm192 = vcmp.eq.s32.totalorder %v172, %v191
      %vm193 = vcmp.eq.s32.totalorder %v173, %v191
      %vm194 = vcmp.eq.s32.totalorder %v174, %v191
      %vm195 = vcmp.eq.s32.totalorder %v175, %v191
      %vm196 = vcmp.eq.s32.totalorder %v176, %v191
      %vm197 = vcmp.eq.s32.totalorder %v177, %v191
      %vm198 = vcmp.eq.s32.totalorder %v178, %v191
      %vm199 = vcmp.eq.s32.totalorder %v179, %v191
      %vm200 = vcmp.eq.s32.totalorder %v180, %v191
      %vm201 = vcmp.eq.s32.totalorder %v181, %v191
      %vm202 = vcmp.eq.s32.totalorder %v182, %v191
      %vm203 = vcmp.eq.s32.totalorder %v183, %v191
      %vm204 = vcmp.eq.s32.totalorder %v184, %v191
      %vm205 = vcmp.eq.s32.totalorder %v185, %v191
      %vm206 = vcmp.eq.s32.totalorder %v186, %v191
      %vm207 = vcmp.eq.s32.totalorder %v187, %v191
      %v208 = vsel %vm192, 1, 0
      %v209 = vsel %vm193, 1, 0
      %v210 = vsel %vm194, 1, 0
      %v211 = vsel %vm195, 1, 0
      %v212 = vsel %vm196, 1, 0
      %v213 = vsel %vm197, 1, 0
      %v214 = vsel %vm198, 1, 0
      %v215 = vsel %vm199, 1, 0
      %v216 = vsel %vm200, 1, 0
      %v217 = vsel %vm201, 1, 0
      %v218 = vsel %vm202, 1, 0
      %v219 = vsel %vm203, 1, 0
      %v220 = vsel %vm204, 1, 0
      %v221 = vsel %vm205, 1, 0
      %v222 = vsel %vm206, 1, 0
      %v223 = vsel %vm207, 1, 0
      %v224 = vcvt.s32.f32 %v208
      %v225 = vcvt.s32.f32 %v209
      %v226 = vcvt.s32.f32 %v210
      %v227 = vcvt.s32.f32 %v211
      %v228 = vcvt.s32.f32 %v212
      %v229 = vcvt.s32.f32 %v213
      %v230 = vcvt.s32.f32 %v214
      %v231 = vcvt.s32.f32 %v215
      %v232 = vcvt.s32.f32 %v216
      %v233 = vcvt.s32.f32 %v217
      %v234 = vcvt.s32.f32 %v218
      %v235 = vcvt.s32.f32 %v219
      %v236 = vcvt.s32.f32 %v220
      %v237 = vcvt.s32.f32 %v221
      %v238 = vcvt.s32.f32 %v222
      %v239 = vcvt.s32.f32 %v223
      %v241 = vlaneseq
      %v242 = vshrl.u32 %v241, 7
      %v243 = vsub.s32 0, %v242
      %v244 = vrot.slane %v162, %v243
      %v246 = vmul.f32 %v224, %v244
      %v247 = vmul.f32 %v225, %v244
      %v248 = vmul.f32 %v226, %v244
      %v249 = vmul.f32 %v227, %v244
      %v250 = vmul.f32 %v228, %v244
      %v251 = vmul.f32 %v229, %v244
      %v252 = vmul.f32 %v230, %v244
      %v253 = vmul.f32 %v231, %v244
      %v254 = vmul.f32 %v232, %v244
      %v255 = vmul.f32 %v233, %v244
      %v256 = vmul.f32 %v234, %v244
      %v257 = vmul.f32 %v235, %v244
      %v258 = vmul.f32 %v236, %v244
      %v259 = vmul.f32 %v237, %v244
      %v260 = vmul.f32 %v238, %v244
      %v261 = vmul.f32 %v239, %v244
      %262 = vmatprep.subr.mxu0 0.0
      %263 = vmatpush1.msra.mxu0 %v110
      %264 = vmatprep.subr.mxu0 0.0
      %265 = vmatpush1.msra.mxu0 %v111
      %266 = vmatprep.subr.mxu0 0.0
      %267 = vmatpush1.msra.mxu0 %v112
      %268 = vmatprep.subr.mxu0 0.0
      %269 = vmatpush1.msra.mxu0 %v113
      %270 = vmatprep.subr.mxu0 0.0
      %271 = vmatpush1.msra.mxu0 %v114
      %272 = vmatprep.subr.mxu0 0.0
      %273 = vmatpush1.msra.mxu0 %v115
      %274 = vmatprep.subr.mxu0 0.0
      %275 = vmatpush1.msra.mxu0 %v116
      %276 = vmatprep.subr.mxu0 0.0
      %277 = vmatpush1.msra.mxu0 %v117
      %278 = vmatprep.subr.mxu0 0.0
      %279 = vmatpush1.msra.mxu0 %v118
      %280 = vmatprep.subr.mxu0 0.0
      %281 = vmatpush1.msra.mxu0 %v119
      %282 = vmatprep.subr.mxu0 0.0
      %283 = vmatpush1.msra.mxu0 %v120
      %284 = vmatprep.subr.mxu0 0.0
      %285 = vmatpush1.msra.mxu0 %v121
      %286 = vmatprep.subr.mxu0 0.0
      %287 = vmatpush1.msra.mxu0 %v122
      %288 = vmatprep.subr.mxu0 0.0
      %289 = vmatpush1.msra.mxu0 %v123
      %290 = vmatprep.subr.mxu0 0.0
      %291 = vmatpush1.msra.mxu0 %v124
      %292 = vmatprep.subr.mxu0 0.0
      %293 = vmatpush1.msra.mxu0 %v125
      %294 = vmatprep.subr.mxu0 0.0
      %295 = vmatpush1.msra.mxu0 0.0
      %296 = vmatprep.subr.mxu0 0.0
      %297 = vmatpush1.msra.mxu0 0.0
      %298 = vmatprep.subr.mxu0 0.0
      %299 = vmatpush1.msra.mxu0 0.0
      %300 = vmatprep.subr.mxu0 0.0
      %301 = vmatpush1.msra.mxu0 0.0
      %302 = vmatprep.subr.mxu0 0.0
      %303 = vmatpush1.msra.mxu0 0.0
      %304 = vmatprep.subr.mxu0 0.0
      %305 = vmatpush1.msra.mxu0 0.0
      %306 = vmatprep.subr.mxu0 0.0
      %307 = vmatpush1.msra.mxu0 0.0
      %308 = vmatprep.subr.mxu0 0.0
      %309 = vmatpush1.msra.mxu0 0.0
      %310 = vmatprep.subr.mxu0 0.0
      %311 = vmatpush1.msra.mxu0 0.0
      %312 = vmatprep.subr.mxu0 0.0
      %313 = vmatpush1.msra.mxu0 0.0
      %314 = vmatprep.subr.mxu0 0.0
      %315 = vmatpush1.msra.mxu0 0.0
      %316 = vmatprep.subr.mxu0 0.0
      %317 = vmatpush1.msra.mxu0 0.0
      %318 = vmatprep.subr.mxu0 0.0
      %319 = vmatpush1.msra.mxu0 0.0
      %320 = vmatprep.subr.mxu0 0.0
      %321 = vmatpush1.msra.mxu0 0.0
      %322 = vmatprep.subr.mxu0 0.0
      %323 = vmatpush1.msra.mxu0 0.0
      %324 = vmatprep.subr.mxu0 0.0
      %325 = vmatpush1.msra.mxu0 0.0
      %326 = vmatprep.mubr.f32.mxu0 0.0
      %327 = vmatmul.mubr.f32.gmra.mrb[0].mxu0 %v170
      %v328 = vpop.f32.mrb[0].mxu0
      %v329 = vadd.f32 0.0, %v328
      %v330 = vpop.f32.mrb[0].mxu0
      %331 = vdwg.mxu0
      %v332 = vpack.c.bf16 %v329, %v329
      %s333 = smul.u32 %s135, 4
      %s334 = smul.addr %s333, 4
      %s335 = scalar_lea.vmem %s5, %s334
      %v336 = vld [vmem:[%s335] sm:$0xf]
      %v337 = vld [vmem:[%s335 + $0x4] sm:$0xf]
      %v338 = vld [vmem:[%s335 + $0x8] sm:$0xf]
      %v339 = vld [vmem:[%s335 + $0xc] sm:$0xf]
      %v344 = vunpack.c.l.b16 %v336
      %v345 = vunpack.c.l.b16 %v337
      %v346 = vunpack.c.l.b16 %v338
      %v347 = vunpack.c.l.b16 %v339
      %v348 = vpack.c.b16 %v345, %v344
      %v349 = vpack.c.b16 %v347, %v346
      %vm352 = vcmask 261120
      %v354 = vsel %vm352, %v332, 0
      %356 = vmatprep.subr.bf16.mxu0 0
      %357 = vmatpush1.bf16.msra.mxu0 %v348
      %358 = vmatprep.subr.bf16.mxu0 0
      %359 = vmatpush1.bf16.msra.mxu0 %v349
      %360 = vmatprep.subr.bf16.mxu0 0
      %361 = vmatpush1.bf16.msra.mxu0 0
      %362 = vmatprep.subr.bf16.mxu0 0
      %363 = vmatpush1.bf16.msra.mxu0 0
      %364 = vmatprep.subr.bf16.mxu0 0
      %365 = vmatpush1.bf16.msra.mxu0 0
      %366 = vmatprep.subr.bf16.mxu0 0
      %367 = vmatpush1.bf16.msra.mxu0 0
      %368 = vmatprep.subr.bf16.mxu0 0
      %369 = vmatpush1.bf16.msra.mxu0 0
      %370 = vmatprep.subr.bf16.mxu0 0
      %371 = vmatpush1.bf16.msra.mxu0 0
      %372 = vmatprep.subr.bf16.mxu0 0
      %373 = vmatpush1.bf16.msra.mxu0 0
      %374 = vmatprep.subr.bf16.mxu0 0
      %375 = vmatpush1.bf16.msra.mxu0 0
      %376 = vmatprep.subr.bf16.mxu0 0
      %377 = vmatpush1.bf16.msra.mxu0 0
      %378 = vmatprep.subr.bf16.mxu0 0
      %379 = vmatpush1.bf16.msra.mxu0 0
      %380 = vmatprep.subr.bf16.mxu0 0
      %381 = vmatpush1.bf16.msra.mxu0 0
      %382 = vmatprep.subr.bf16.mxu0 0
      %383 = vmatpush1.bf16.msra.mxu0 0
      %384 = vmatprep.subr.bf16.mxu0 0
      %385 = vmatpush1.bf16.msra.mxu0 0
      %386 = vmatprep.subr.bf16.mxu0 0
      %387 = vmatpush1.bf16.msra.mxu0 0
      %388 = vmatprep.mubr.bf16.mxu0 0
      %389 = vmatmul.mubr.bf16.gmra.mrb[0].mxu0 %v354
      %v390 = vpop.f32.mrb[0].mxu0
      %v391 = vadd.f32 0.0, %v390
      %v392 = vpop.f32.mrb[0].mxu0
      %v393 = vpop.f32.mrb[0].mxu0
      %v394 = vpop.f32.mrb[0].mxu0
      %395 = vdwg.mxu0
      %vm396 = vcmask 64512
      %v398 = vsel %vm396, %v246, 0
      %v401 = vsel %vm396, %v247, 0
      %v404 = vsel %vm396, %v248, 0
      %v407 = vsel %vm396, %v249, 0
      %v410 = vsel %vm396, %v250, 0
      %v413 = vsel %vm396, %v251, 0
      %v416 = vsel %vm396, %v252, 0
      %v419 = vsel %vm396, %v253, 0
      %v422 = vsel %vm396, %v254, 0
      %v425 = vsel %vm396, %v255, 0
      %v428 = vsel %vm396, %v256, 0
      %v431 = vsel %vm396, %v257, 0
      %v434 = vsel %vm396, %v258, 0
      %v437 = vsel %vm396, %v259, 0
      %v440 = vsel %vm396, %v260, 0
      %v443 = vsel %vm396, %v261, 0
      %445 = vmatprep.subr.mxu0 0.0
      %446 = vmatpush1.msra.mxu0 %v391
      %447 = vmatprep.subr.mxu0 0.0
      %448 = vmatpush1.msra.mxu0 0.0
      %449 = vmatprep.subr.mxu0 0.0
      %450 = vmatpush1.msra.mxu0 0.0
      %451 = vmatprep.subr.mxu0 0.0
      %452 = vmatpush1.msra.mxu0 0.0
      %453 = vmatprep.subr.mxu0 0.0
      %454 = vmatpush1.msra.mxu0 0.0
      %455 = vmatprep.subr.mxu0 0.0
      %456 = vmatpush1.msra.mxu0 0.0
      %457 = vmatprep.subr.mxu0 0.0
      %458 = vmatpush1.msra.mxu0 0.0
      %459 = vmatprep.subr.mxu0 0.0
      %460 = vmatpush1.msra.mxu0 0.0
      %461 = vmatprep.subr.mxu0 0.0
      %462 = vmatpush1.msra.mxu0 0.0
      %463 = vmatprep.subr.mxu0 0.0
      %464 = vmatpush1.msra.mxu0 0.0
      %465 = vmatprep.subr.mxu0 0.0
      %466 = vmatpush1.msra.mxu0 0.0
      %467 = vmatprep.subr.mxu0 0.0
      %468 = vmatpush1.msra.mxu0 0.0
      %469 = vmatprep.subr.mxu0 0.0
      %470 = vmatpush1.msra.mxu0 0.0
      %471 = vmatprep.subr.mxu0 0.0
      %472 = vmatpush1.msra.mxu0 0.0
      %473 = vmatprep.subr.mxu0 0.0
      %474 = vmatpush1.msra.mxu0 0.0
      %475 = vmatprep.subr.mxu0 0.0
      %476 = vmatpush1.msra.mxu0 0.0
      %477 = vmatprep.subr.mxu0 0.0
      %478 = vmatpush1.msra.mxu0 0.0
      %479 = vmatprep.subr.mxu0 0.0
      %480 = vmatpush1.msra.mxu0 0.0
      %481 = vmatprep.subr.mxu0 0.0
      %482 = vmatpush1.msra.mxu0 0.0
      %483 = vmatprep.subr.mxu0 0.0
      %484 = vmatpush1.msra.mxu0 0.0
      %485 = vmatprep.subr.mxu0 0.0
      %486 = vmatpush1.msra.mxu0 0.0
      %487 = vmatprep.subr.mxu0 0.0
      %488 = vmatpush1.msra.mxu0 0.0
      %489 = vmatprep.subr.mxu0 0.0
      %490 = vmatpush1.msra.mxu0 0.0
      %491 = vmatprep.subr.mxu0 0.0
      %492 = vmatpush1.msra.mxu0 0.0
      %493 = vmatprep.subr.mxu0 0.0
      %494 = vmatpush1.msra.mxu0 0.0
      %495 = vmatprep.subr.mxu0 0.0
      %496 = vmatpush1.msra.mxu0 0.0
      %497 = vmatprep.subr.mxu0 0.0
      %498 = vmatpush1.msra.mxu0 0.0
      %499 = vmatprep.subr.mxu0 0.0
      %500 = vmatpush1.msra.mxu0 0.0
      %501 = vmatprep.subr.mxu0 0.0
      %502 = vmatpush1.msra.mxu0 0.0
      %503 = vmatprep.subr.mxu0 0.0
      %504 = vmatpush1.msra.mxu0 0.0
      %505 = vmatprep.subr.mxu0 0.0
      %506 = vmatpush1.msra.mxu0 0.0
      %507 = vmatprep.subr.mxu0 0.0
      %508 = vmatpush1.msra.mxu0 0.0
      %509 = vmatprep.mubr.f32.mxu0 0.0
      %510 = vmatmul.mubr.f32.gmra.mrb[0].mxu0 %v398
      %v511 = vpop.f32.mrb[0].mxu0
      %v512 = vadd.f32 0.0, %v511
      %v513 = vpop.f32.mrb[0].mxu0
      %514 = vmatprep.mubr.f32.mxu0 0.0
      %515 = vmatmul.mubr.f32.gmra.mrb[0].mxu0 %v401
      %v516 = vpop.f32.mrb[0].mxu0
      %v517 = vadd.f32 0.0, %v516
      %v518 = vpop.f32.mrb[0].mxu0
      %519 = vmatprep.mubr.f32.mxu0 0.0
      %520 = vmatmul.mubr.f32.gmra.mrb[0].mxu0 %v404
      %v521 = vpop.f32.mrb[0].mxu0
      %v522 = vadd.f32 0.0, %v521
      %v523 = vpop.f32.mrb[0].mxu0
      %524 = vmatprep.mubr.f32.mxu0 0.0
      %525 = vmatmul.mubr.f32.gmra.mrb[0].mxu0 %v407
      %v526 = vpop.f32.mrb[0].mxu0
      %v527 = vadd.f32 0.0, %v526
      %v528 = vpop.f32.mrb[0].mxu0
      %529 = vmatprep.mubr.f32.mxu0 0.0
      %530 = vmatmul.mubr.f32.gmra.mrb[0].mxu0 %v410
      %v531 = vpop.f32.mrb[0].mxu0
      %v532 = vadd.f32 0.0, %v531
      %v533 = vpop.f32.mrb[0].mxu0
      %534 = vmatprep.mubr.f32.mxu0 0.0
      %535 = vmatmul.mubr.f32.gmra.mrb[0].mxu0 %v413
      %v536 = vpop.f32.mrb[0].mxu0
      %v537 = vadd.f32 0.0, %v536
      %v538 = vpop.f32.mrb[0].mxu0
      %539 = vmatprep.mubr.f32.mxu0 0.0
      %540 = vmatmul.mubr.f32.gmra.mrb[0].mxu0 %v416
      %v541 = vpop.f32.mrb[0].mxu0
      %v542 = vadd.f32 0.0, %v541
      %v543 = vpop.f32.mrb[0].mxu0
      %544 = vmatprep.mubr.f32.mxu0 0.0
      %545 = vmatmul.mubr.f32.gmra.mrb[0].mxu0 %v419
      %v546 = vpop.f32.mrb[0].mxu0
      %v547 = vadd.f32 0.0, %v546
      %v548 = vpop.f32.mrb[0].mxu0
      %549 = vmatprep.mubr.f32.mxu0 0.0
      %550 = vmatmul.mubr.f32.gmra.mrb[0].mxu0 %v422
      %v551 = vpop.f32.mrb[0].mxu0
      %v552 = vadd.f32 0.0, %v551
      %v553 = vpop.f32.mrb[0].mxu0
      %554 = vmatprep.mubr.f32.mxu0 0.0
      %555 = vmatmul.mubr.f32.gmra.mrb[0].mxu0 %v425
      %v556 = vpop.f32.mrb[0].mxu0
      %v557 = vadd.f32 0.0, %v556
      %v558 = vpop.f32.mrb[0].mxu0
      %559 = vmatprep.mubr.f32.mxu0 0.0
      %560 = vmatmul.mubr.f32.gmra.mrb[0].mxu0 %v428
      %v561 = vpop.f32.mrb[0].mxu0
      %v562 = vadd.f32 0.0, %v561
      %v563 = vpop.f32.mrb[0].mxu0
      %564 = vmatprep.mubr.f32.mxu0 0.0
      %565 = vmatmul.mubr.f32.gmra.mrb[0].mxu0 %v431
      %v566 = vpop.f32.mrb[0].mxu0
      %v567 = vadd.f32 0.0, %v566
      %v568 = vpop.f32.mrb[0].mxu0
      %569 = vmatprep.mubr.f32.mxu0 0.0
      %570 = vmatmul.mubr.f32.gmra.mrb[0].mxu0 %v434
      %v571 = vpop.f32.mrb[0].mxu0
      %v572 = vadd.f32 0.0, %v571
      %v573 = vpop.f32.mrb[0].mxu0
      %574 = vmatprep.mubr.f32.mxu0 0.0
      %575 = vmatmul.mubr.f32.gmra.mrb[0].mxu0 %v437
      %v576 = vpop.f32.mrb[0].mxu0
      %v577 = vadd.f32 0.0, %v576
      %v578 = vpop.f32.mrb[0].mxu0
      %579 = vmatprep.mubr.f32.mxu0 0.0
      %580 = vmatmul.mubr.f32.gmra.mrb[0].mxu0 %v440
      %v581 = vpop.f32.mrb[0].mxu0
      %v582 = vadd.f32 0.0, %v581
      %v583 = vpop.f32.mrb[0].mxu0
      %584 = vmatprep.mubr.f32.mxu0 0.0
      %585 = vmatmul.mubr.f32.gmra.mrb[0].mxu0 %v443
      %v586 = vpop.f32.mrb[0].mxu0
      %v587 = vadd.f32 0.0, %v586
      %v588 = vpop.f32.mrb[0].mxu0
      %589 = vdwg.mxu0
      %v590 = vadd.f32 %v140, %v512
      %v591 = vadd.f32 %v141, %v517
      %v592 = vadd.f32 %v142, %v522
      %v593 = vadd.f32 %v143, %v527
      %v594 = vadd.f32 %v144, %v532
      %v595 = vadd.f32 %v145, %v537
      %v596 = vadd.f32 %v146, %v542
      %v597 = vadd.f32 %v147, %v547
      %v598 = vadd.f32 %v148, %v552
      %v599 = vadd.f32 %v149, %v557
      %v600 = vadd.f32 %v150, %v562
      %v601 = vadd.f32 %v151, %v567
      %v602 = vadd.f32 %v152, %v572
      %v603 = vadd.f32 %v153, %v577
      %v604 = vadd.f32 %v154, %v582
      %v605 = vadd.f32 %v155, %v587
    $region94: #{tpu_custom_call.1} parent=1 // loop_footer
      %s139 = sadd.s32 1, %s135
    $region95: #{tpu_custom_call.1} parent=1 // loop_footer_branch
      %134 = sbr.rel target = $region91
    $region96: #{tpu_custom_call.1} parent=1 // loop_exit
      _
    %v606 = vld [vmem:[%s7] sm:$0x1]
    %v608 = vlaneseq
    %v609 = vshrl.u32 %v608, 7
    %v610 = vsub.s32 0, %v609
    %v611 = vrot.slane %v606, %v610
    %v613 = vadd.f32 %v140, %v611
    %v614 = vadd.f32 %v141, %v611
    %v615 = vadd.f32 %v142, %v611
    %v616 = vadd.f32 %v143, %v611
    %v617 = vadd.f32 %v144, %v611
    %v618 = vadd.f32 %v145, %v611
    %v619 = vadd.f32 %v146, %v611
    %v620 = vadd.f32 %v147, %v611
    %v621 = vadd.f32 %v148, %v611
    %v622 = vadd.f32 %v149, %v611
    %v623 = vadd.f32 %v150, %v611
    %v624 = vadd.f32 %v151, %v611
    %v625 = vadd.f32 %v152, %v611
    %v626 = vadd.f32 %v153, %v611
    %v627 = vadd.f32 %v154, %v611
    %v628 = vadd.f32 %v155, %v611
    %v629 = vmax.f32 %v613, 0.0
    %v630 = vmax.f32 %v614, 0.0
    %v631 = vmax.f32 %v615, 0.0
    %v632 = vmax.f32 %v616, 0.0
    %v633 = vmax.f32 %v617, 0.0
    %v634 = vmax.f32 %v618, 0.0
    %v635 = vmax.f32 %v619, 0.0
    %v636 = vmax.f32 %v620, 0.0
    %v637 = vmax.f32 %v621, 0.0
    %v638 = vmax.f32 %v622, 0.0
    %v639 = vmax.f32 %v623, 0.0
    %v640 = vmax.f32 %v624, 0.0
    %v641 = vmax.f32 %v625, 0.0
    %v642 = vmax.f32 %v626, 0.0
    %v643 = vmax.f32 %v627, 0.0
    %v644 = vmax.f32 %v628, 0.0
    %v645 = vld [vmem:[#allocation3] sm:$0xf]
    %v646 = vld [vmem:[#allocation3 + $0x4] sm:$0xf]
    %v647 = vld [vmem:[#allocation3 + $0x8] sm:$0xf]
    %v648 = vld [vmem:[#allocation3 + $0xc] sm:$0xf]
    %v649 = vld [vmem:[%s8] sm:$0x1]
    %v651 = vlaneseq
    %v652 = vshrl.u32 %v651, 7
    %v653 = vsub.s32 0, %v652
    %v654 = vrot.slane %v649, %v653
    %v660 = vunpack.c.l.b16 %v645
    %v661 = vunpack.c.l.b16 %v646
    %v662 = vunpack.c.l.b16 %v647
    %v663 = vunpack.c.l.b16 %v648
    %v664 = vpack.c.b16 %v661, %v660
    %v665 = vpack.c.b16 %v663, %v662
    %vm668 = vcmask 261120
    %v670 = vsel %vm668, %v126, 0
    %v673 = vsel %vm668, %v127, 0
    %v676 = vsel %vm668, %v128, 0
    %v679 = vsel %vm668, %v129, 0
    %v682 = vsel %vm668, %v130, 0
    %v685 = vsel %vm668, %v131, 0
    %v688 = vsel %vm668, %v132, 0
    %v691 = vsel %vm668, %v133, 0
    %693 = vmatprep.subr.bf16.mxu0 0
    %694 = vmatpush1.bf16.msra.mxu0 %v664
    %695 = vmatprep.subr.bf16.mxu0 0
    %696 = vmatpush1.bf16.msra.mxu0 %v665
    %697 = vmatprep.subr.bf16.mxu0 0
    %698 = vmatpush1.bf16.msra.mxu0 0
    %699 = vmatprep.subr.bf16.mxu0 0
    %700 = vmatpush1.bf16.msra.mxu0 0
    %701 = vmatprep.subr.bf16.mxu0 0
    %702 = vmatpush1.bf16.msra.mxu0 0
    %703 = vmatprep.subr.bf16.mxu0 0
    %704 = vmatpush1.bf16.msra.mxu0 0
    %705 = vmatprep.subr.bf16.mxu0 0
    %706 = vmatpush1.bf16.msra.mxu0 0
    %707 = vmatprep.subr.bf16.mxu0 0
    %708 = vmatpush1.bf16.msra.mxu0 0
    %709 = vmatprep.subr.bf16.mxu0 0
    %710 = vmatpush1.bf16.msra.mxu0 0
    %711 = vmatprep.subr.bf16.mxu0 0
    %712 = vmatpush1.bf16.msra.mxu0 0
    %713 = vmatprep.subr.bf16.mxu0 0
    %714 = vmatpush1.bf16.msra.mxu0 0
    %715 = vmatprep.subr.bf16.mxu0 0
    %716 = vmatpush1.bf16.msra.mxu0 0
    %717 = vmatprep.subr.bf16.mxu0 0
    %718 = vmatpush1.bf16.msra.mxu0 0
    %719 = vmatprep.subr.bf16.mxu0 0
    %720 = vmatpush1.bf16.msra.mxu0 0
    %721 = vmatprep.subr.bf16.mxu0 0
    %722 = vmatpush1.bf16.msra.mxu0 0
    %723 = vmatprep.subr.bf16.mxu0 0
    %724 = vmatpush1.bf16.msra.mxu0 0
    %725 = vmatprep.mubr.bf16.mxu0 0
    %726 = vmatmul.mubr.bf16.gmra.mrb[0].mxu0 %v670
    %v727 = vpop.f32.mrb[0].mxu0
    %v728 = vadd.f32 %v654, %v727
    %v729 = vpop.f32.mrb[0].mxu0
    %v730 = vpop.f32.mrb[0].mxu0
    %v731 = vadd.f32 %v654, %v730
    %v732 = vpop.f32.mrb[0].mxu0
    %733 = vmatprep.mubr.bf16.mxu0 0
    %734 = vmatmul.mubr.bf16.gmra.mrb[0].mxu0 %v673
    %v735 = vpop.f32.mrb[0].mxu0
    %v736 = vadd.f32 %v654, %v735
    %v737 = vpop.f32.mrb[0].mxu0
    %v738 = vpop.f32.mrb[0].mxu0
    %v739 = vadd.f32 %v654, %v738
    %v740 = vpop.f32.mrb[0].mxu0
    %741 = vmatprep.mubr.bf16.mxu0 0
    %742 = vmatmul.mubr.bf16.gmra.mrb[0].mxu0 %v676
    %v743 = vpop.f32.mrb[0].mxu0
    %v744 = vadd.f32 %v654, %v743
    %v745 = vpop.f32.mrb[0].mxu0
    %v746 = vpop.f32.mrb[0].mxu0
    %v747 = vadd.f32 %v654, %v746
    %v748 = vpop.f32.mrb[0].mxu0
    %749 = vmatprep.mubr.bf16.mxu0 0
    %750 = vmatmul.mubr.bf16.gmra.mrb[0].mxu0 %v679
    %v751 = vpop.f32.mrb[0].mxu0
    %v752 = vadd.f32 %v654, %v751
    %v753 = vpop.f32.mrb[0].mxu0
    %v754 = vpop.f32.mrb[0].mxu0
    %v755 = vadd.f32 %v654, %v754
    %v756 = vpop.f32.mrb[0].mxu0
    %757 = vmatprep.mubr.bf16.mxu0 0
    %758 = vmatmul.mubr.bf16.gmra.mrb[0].mxu0 %v682
    %v759 = vpop.f32.mrb[0].mxu0
    %v760 = vadd.f32 %v654, %v759
    %v761 = vpop.f32.mrb[0].mxu0
    %v762 = vpop.f32.mrb[0].mxu0
    %v763 = vadd.f32 %v654, %v762
    %v764 = vpop.f32.mrb[0].mxu0
    %765 = vmatprep.mubr.bf16.mxu0 0
    %766 = vmatmul.mubr.bf16.gmra.mrb[0].mxu0 %v685
    %v767 = vpop.f32.mrb[0].mxu0
    %v768 = vadd.f32 %v654, %v767
    %v769 = vpop.f32.mrb[0].mxu0
    %v770 = vpop.f32.mrb[0].mxu0
    %v771 = vadd.f32 %v654, %v770
    %v772 = vpop.f32.mrb[0].mxu0
    %773 = vmatprep.mubr.bf16.mxu0 0
    %774 = vmatmul.mubr.bf16.gmra.mrb[0].mxu0 %v688
    %v775 = vpop.f32.mrb[0].mxu0
    %v776 = vadd.f32 %v654, %v775
    %v777 = vpop.f32.mrb[0].mxu0
    %v778 = vpop.f32.mrb[0].mxu0
    %v779 = vadd.f32 %v654, %v778
    %v780 = vpop.f32.mrb[0].mxu0
    %781 = vmatprep.mubr.bf16.mxu0 0
    %782 = vmatmul.mubr.bf16.gmra.mrb[0].mxu0 %v691
    %v783 = vpop.f32.mrb[0].mxu0
    %v784 = vadd.f32 %v654, %v783
    %v785 = vpop.f32.mrb[0].mxu0
    %v786 = vpop.f32.mrb[0].mxu0
    %v787 = vadd.f32 %v654, %v786
    %v788 = vpop.f32.mrb[0].mxu0
    %789 = vdwg.mxu0
    %v790 = vmax.f32 %v728, 0.0
    %v791 = vmax.f32 %v731, 0.0
    %v792 = vmax.f32 %v736, 0.0
    %v793 = vmax.f32 %v739, 0.0
    %v794 = vmax.f32 %v744, 0.0
    %v795 = vmax.f32 %v747, 0.0
    %v796 = vmax.f32 %v752, 0.0
    %v797 = vmax.f32 %v755, 0.0
    %v798 = vmax.f32 %v760, 0.0
    %v799 = vmax.f32 %v763, 0.0
    %v800 = vmax.f32 %v768, 0.0
    %v801 = vmax.f32 %v771, 0.0
    %v802 = vmax.f32 %v776, 0.0
    %v803 = vmax.f32 %v779, 0.0
    %v804 = vmax.f32 %v784, 0.0
    %v805 = vmax.f32 %v787, 0.0
    %v806 = vadd.f32 %v629, %v790
    %v807 = vadd.f32 %v630, %v791
    %v808 = vadd.f32 %v631, %v792
    %v809 = vadd.f32 %v632, %v793
    %v810 = vadd.f32 %v633, %v794
    %v811 = vadd.f32 %v634, %v795
    %v812 = vadd.f32 %v635, %v796
    %v813 = vadd.f32 %v636, %v797
    %v814 = vadd.f32 %v637, %v798
    %v815 = vadd.f32 %v638, %v799
    %v816 = vadd.f32 %v639, %v800
    %v817 = vadd.f32 %v640, %v801
    %v818 = vadd.f32 %v641, %v802
    %v819 = vadd.f32 %v642, %v803
    %v820 = vadd.f32 %v643, %v804
    %v821 = vadd.f32 %v644, %v805
    %v822 = vld [vmem:[%s9] sm:$0x1]
    %v824 = vlaneseq
    %v825 = vshrl.u32 %v824, 7
    %v826 = vsub.s32 0, %v825
    %v827 = vrot.slane %v822, %v826
    %v829 = vmul.f32 %v806, %v827
    %v830 = vmul.f32 %v807, %v827
    %v831 = vmul.f32 %v808, %v827
    %v832 = vmul.f32 %v809, %v827
    %v833 = vmul.f32 %v810, %v827
    %v834 = vmul.f32 %v811, %v827
    %v835 = vmul.f32 %v812, %v827
    %v836 = vmul.f32 %v813, %v827
    %v837 = vmul.f32 %v814, %v827
    %v838 = vmul.f32 %v815, %v827
    %v839 = vmul.f32 %v816, %v827
    %v840 = vmul.f32 %v817, %v827
    %v841 = vmul.f32 %v818, %v827
    %v842 = vmul.f32 %v819, %v827
    %v843 = vmul.f32 %v820, %v827
    %v844 = vmul.f32 %v821, %v827
    %v845 = vld [vmem:[%s10] sm:$0x1]
    %v847 = vlaneseq
    %v848 = vshrl.u32 %v847, 7
    %v849 = vsub.s32 0, %v848
    %v850 = vrot.slane %v845, %v849
    %v852 = vadd.f32 %v829, %v850
    %v853 = vadd.f32 %v830, %v850
    %v854 = vadd.f32 %v831, %v850
    %v855 = vadd.f32 %v832, %v850
    %v856 = vadd.f32 %v833, %v850
    %v857 = vadd.f32 %v834, %v850
    %v858 = vadd.f32 %v835, %v850
    %v859 = vadd.f32 %v836, %v850
    %v860 = vadd.f32 %v837, %v850
    %v861 = vadd.f32 %v838, %v850
    %v862 = vadd.f32 %v839, %v850
    %v863 = vadd.f32 %v840, %v850
    %v864 = vadd.f32 %v841, %v850
    %v865 = vadd.f32 %v842, %v850
    %v866 = vadd.f32 %v843, %v850
    %v867 = vadd.f32 %v844, %v850
    %v868 = vpack.c.bf16 %v853, %v852
    %v869 = vpack.c.bf16 %v855, %v854
    %v870 = vpack.c.bf16 %v857, %v856
    %v871 = vpack.c.bf16 %v859, %v858
    %v872 = vpack.c.bf16 %v861, %v860
    %v873 = vpack.c.bf16 %v863, %v862
    %v874 = vpack.c.bf16 %v865, %v864
    %v875 = vpack.c.bf16 %v867, %v866
    loop: start=0, step=1, limit=32
    $region97: #{tpu_custom_call.1} parent=1 // loop_pre_header
      _
    $region98: #{tpu_custom_call.1} parent=1 // loop_header
      %s877 = sphi 0, %s881
      %p878 = scmp.ge.s32.totalorder %s877, 32
      %v882 = vphi 0.0, %v1397
      %v883 = vphi 0.0, %v1398
      %v884 = vphi 0.0, %v1399
      %v885 = vphi 0.0, %v1400
      %v886 = vphi 0.0, %v1401
      %v887 = vphi 0.0, %v1402
      %v888 = vphi 0.0, %v1403
      %v889 = vphi 0.0, %v1404
      %v890 = vphi 0.0, %v1405
      %v891 = vphi 0.0, %v1406
      %v892 = vphi 0.0, %v1407
      %v893 = vphi 0.0, %v1408
      %v894 = vphi 0.0, %v1409
      %v895 = vphi 0.0, %v1410
      %v896 = vphi 0.0, %v1411
      %v897 = vphi 0.0, %v1412
      %v898 = vphi 0.0, %v1413
      %v899 = vphi 0.0, %v1414
      %v900 = vphi 0.0, %v1415
      %v901 = vphi 0.0, %v1416
      %v902 = vphi 0.0, %v1417
      %v903 = vphi 0.0, %v1418
      %v904 = vphi 0.0, %v1419
      %v905 = vphi 0.0, %v1420
      %v906 = vphi 0.0, %v1421
      %v907 = vphi 0.0, %v1422
      %v908 = vphi 0.0, %v1423
      %v909 = vphi 0.0, %v1424
      %v910 = vphi 0.0, %v1425
      %v911 = vphi 0.0, %v1426
      %v912 = vphi 0.0, %v1427
      %v913 = vphi 0.0, %v1428
    $region99: #{tpu_custom_call.1} parent=1 // loop_header_branch
      %880 = sbr.rel (%p878) target = $region103
    $region100: #{tpu_custom_call.1} parent=1 // loop_body
      %s914 = smul.u32 %s877, 8
      %s915 = scalar_lea.vmem %s0, %s914
      %v916 = vld [vmem:[%s915] sm:$0xff]
      %s917 = scalar_lea.vmem %s1, %s877
      %v918 = vld [vmem:[%s917] sm:$0x1]
      %s919 = scalar_lea.vmem %s2, %s877
      %v920 = vld [vmem:[%s919] sm:$0x1]
      %v921 = vlaneseq
      %v922 = vand.u32 %v921, 127
      %923 = vset.pattern.permute.xlu0 0
      %924 = vperm.xlu0 %923, %v916
      %v925 = vpop.permute.xlu0 %924
      %vm926 = vcmp.eq.s32.totalorder %v925, %v922
      %v927 = vsel %vm926, 1, 0
      %v928 = vcvt.s32.f32 %v927
      %v929 = vlaneseq
      %v930 = vshrl.u32 %v929, 7
      %v931 = vadd.s32 %v930, 8
      %v932 = vadd.s32 %v930, 16
      %v933 = vadd.s32 %v930, 24
      %v934 = vadd.s32 %v930, 32
      %v935 = vadd.s32 %v930, 40
      %v936 = vadd.s32 %v930, 48
      %v937 = vadd.s32 %v930, 56
      %v938 = vadd.s32 %v930, 64
      %v939 = vadd.s32 %v930, 72
      %v940 = vadd.s32 %v930, 80
      %v941 = vadd.s32 %v930, 88
      %v942 = vadd.s32 %v930, 96
      %v943 = vadd.s32 %v930, 104
      %v944 = vadd.s32 %v930, 112
      %v945 = vadd.s32 %v930, 120
      %v946 = vlaneseq
      %v947 = vshrl.u32 %v946, 7
      %v948 = vsub.s32 0, %v947
      %v949 = vrot.slane %v918, %v948
      %vm950 = vcmp.eq.s32.totalorder %v930, %v949
      %vm951 = vcmp.eq.s32.totalorder %v931, %v949
      %vm952 = vcmp.eq.s32.totalorder %v932, %v949
      %vm953 = vcmp.eq.s32.totalorder %v933, %v949
      %vm954 = vcmp.eq.s32.totalorder %v934, %v949
      %vm955 = vcmp.eq.s32.totalorder %v935, %v949
      %vm956 = vcmp.eq.s32.totalorder %v936, %v949
      %vm957 = vcmp.eq.s32.totalorder %v937, %v949
      %vm958 = vcmp.eq.s32.totalorder %v938, %v949
      %vm959 = vcmp.eq.s32.totalorder %v939, %v949
      %vm960 = vcmp.eq.s32.totalorder %v940, %v949
      %vm961 = vcmp.eq.s32.totalorder %v941, %v949
      %vm962 = vcmp.eq.s32.totalorder %v942, %v949
      %vm963 = vcmp.eq.s32.totalorder %v943, %v949
      %vm964 = vcmp.eq.s32.totalorder %v944, %v949
      %vm965 = vcmp.eq.s32.totalorder %v945, %v949
      %v966 = vsel %vm950, 1, 0
      %v967 = vsel %vm951, 1, 0
      %v968 = vsel %vm952, 1, 0
      %v969 = vsel %vm953, 1, 0
      %v970 = vsel %vm954, 1, 0
      %v971 = vsel %vm955, 1, 0
      %v972 = vsel %vm956, 1, 0
      %v973 = vsel %vm957, 1, 0
      %v974 = vsel %vm958, 1, 0
      %v975 = vsel %vm959, 1, 0
      %v976 = vsel %vm960, 1, 0
      %v977 = vsel %vm961, 1, 0
      %v978 = vsel %vm962, 1, 0
      %v979 = vsel %vm963, 1, 0
      %v980 = vsel %vm964, 1, 0
      %v981 = vsel %vm965, 1, 0
      %v982 = vcvt.s32.f32 %v966
      %v983 = vcvt.s32.f32 %v967
      %v984 = vcvt.s32.f32 %v968
      %v985 = vcvt.s32.f32 %v969
      %v986 = vcvt.s32.f32 %v970
      %v987 = vcvt.s32.f32 %v971
      %v988 = vcvt.s32.f32 %v972
      %v989 = vcvt.s32.f32 %v973
      %v990 = vcvt.s32.f32 %v974
      %v991 = vcvt.s32.f32 %v975
      %v992 = vcvt.s32.f32 %v976
      %v993 = vcvt.s32.f32 %v977
      %v994 = vcvt.s32.f32 %v978
      %v995 = vcvt.s32.f32 %v979
      %v996 = vcvt.s32.f32 %v980
      %v997 = vcvt.s32.f32 %v981
      %v999 = vlaneseq
      %v1000 = vshrl.u32 %v999, 7
      %v1001 = vsub.s32 0, %v1000
      %v1002 = vrot.slane %v920, %v1001
      %v1004 = vmul.f32 %v982, %v1002
      %v1005 = vmul.f32 %v983, %v1002
      %v1006 = vmul.f32 %v984, %v1002
      %v1007 = vmul.f32 %v985, %v1002
      %v1008 = vmul.f32 %v986, %v1002
      %v1009 = vmul.f32 %v987, %v1002
      %v1010 = vmul.f32 %v988, %v1002
      %v1011 = vmul.f32 %v989, %v1002
      %v1012 = vmul.f32 %v990, %v1002
      %v1013 = vmul.f32 %v991, %v1002
      %v1014 = vmul.f32 %v992, %v1002
      %v1015 = vmul.f32 %v993, %v1002
      %v1016 = vmul.f32 %v994, %v1002
      %v1017 = vmul.f32 %v995, %v1002
      %v1018 = vmul.f32 %v996, %v1002
      %v1019 = vmul.f32 %v997, %v1002
      %1020 = vmatprep.subr.mxu0 0.0
      %1021 = vmatpush1.msra.mxu0 %v852
      %1022 = vmatprep.subr.mxu0 0.0
      %1023 = vmatpush1.msra.mxu0 %v853
      %1024 = vmatprep.subr.mxu0 0.0
      %1025 = vmatpush1.msra.mxu0 %v854
      %1026 = vmatprep.subr.mxu0 0.0
      %1027 = vmatpush1.msra.mxu0 %v855
      %1028 = vmatprep.subr.mxu0 0.0
      %1029 = vmatpush1.msra.mxu0 %v856
      %1030 = vmatprep.subr.mxu0 0.0
      %1031 = vmatpush1.msra.mxu0 %v857
      %1032 = vmatprep.subr.mxu0 0.0
      %1033 = vmatpush1.msra.mxu0 %v858
      %1034 = vmatprep.subr.mxu0 0.0
      %1035 = vmatpush1.msra.mxu0 %v859
      %1036 = vmatprep.subr.mxu0 0.0
      %1037 = vmatpush1.msra.mxu0 %v860
      %1038 = vmatprep.subr.mxu0 0.0
      %1039 = vmatpush1.msra.mxu0 %v861
      %1040 = vmatprep.subr.mxu0 0.0
      %1041 = vmatpush1.msra.mxu0 %v862
      %1042 = vmatprep.subr.mxu0 0.0
      %1043 = vmatpush1.msra.mxu0 %v863
      %1044 = vmatprep.subr.mxu0 0.0
      %1045 = vmatpush1.msra.mxu0 %v864
      %1046 = vmatprep.subr.mxu0 0.0
      %1047 = vmatpush1.msra.mxu0 %v865
      %1048 = vmatprep.subr.mxu0 0.0
      %1049 = vmatpush1.msra.mxu0 %v866
      %1050 = vmatprep.subr.mxu0 0.0
      %1051 = vmatpush1.msra.mxu0 %v867
      %1052 = vmatprep.subr.mxu0 0.0
      %1053 = vmatpush1.msra.mxu0 0.0
      %1054 = vmatprep.subr.mxu0 0.0
      %1055 = vmatpush1.msra.mxu0 0.0
      %1056 = vmatprep.subr.mxu0 0.0
      %1057 = vmatpush1.msra.mxu0 0.0
      %1058 = vmatprep.subr.mxu0 0.0
      %1059 = vmatpush1.msra.mxu0 0.0
      %1060 = vmatprep.subr.mxu0 0.0
      %1061 = vmatpush1.msra.mxu0 0.0
      %1062 = vmatprep.subr.mxu0 0.0
      %1063 = vmatpush1.msra.mxu0 0.0
      %1064 = vmatprep.subr.mxu0 0.0
      %1065 = vmatpush1.msra.mxu0 0.0
      %1066 = vmatprep.subr.mxu0 0.0
      %1067 = vmatpush1.msra.mxu0 0.0
      %1068 = vmatprep.subr.mxu0 0.0
      %1069 = vmatpush1.msra.mxu0 0.0
      %1070 = vmatprep.subr.mxu0 0.0
      %1071 = vmatpush1.msra.mxu0 0.0
      %1072 = vmatprep.subr.mxu0 0.0
      %1073 = vmatpush1.msra.mxu0 0.0
      %1074 = vmatprep.subr.mxu0 0.0
      %1075 = vmatpush1.msra.mxu0 0.0
      %1076 = vmatprep.subr.mxu0 0.0
      %1077 = vmatpush1.msra.mxu0 0.0
      %1078 = vmatprep.subr.mxu0 0.0
      %1079 = vmatpush1.msra.mxu0 0.0
      %1080 = vmatprep.subr.mxu0 0.0
      %1081 = vmatpush1.msra.mxu0 0.0
      %1082 = vmatprep.subr.mxu0 0.0
      %1083 = vmatpush1.msra.mxu0 0.0
      %1084 = vmatprep.mubr.f32.mxu0 0.0
      %1085 = vmatmul.mubr.f32.gmra.mrb[0].mxu0 %v928
      %v1086 = vpop.f32.mrb[0].mxu0
      %v1087 = vadd.f32 0.0, %v1086
      %v1088 = vpop.f32.mrb[0].mxu0
      %1089 = vdwg.mxu0
      %v1090 = vpack.c.bf16 %v1087, %v1087
      %s1091 = smul.u32 %s877, 16
      %s1092 = smul.addr %s1091, 4
      %s1093 = scalar_lea.vmem [#allocation6], %s1092
      %v1094 = vld [vmem:[%s1093] sm:$0xff]
      %v1095 = vld [vmem:[%s1093 + $0x8] sm:$0xff]
      %v1096 = vld [vmem:[%s1093 + $0x10] sm:$0xff]
      %v1097 = vld [vmem:[%s1093 + $0x18] sm:$0xff]
      %v1098 = vld [vmem:[%s1093 + $0x20] sm:$0xff]
      %v1099 = vld [vmem:[%s1093 + $0x28] sm:$0xff]
      %v1100 = vld [vmem:[%s1093 + $0x30] sm:$0xff]
      %v1101 = vld [vmem:[%s1093 + $0x38] sm:$0xff]
      %v1110 = vunpack.c.l.b16 %v1094
      %v1111 = vunpack.c.h.b16 %v1094
      %v1112 = vunpack.c.l.b16 %v1095
      %v1113 = vunpack.c.h.b16 %v1095
      %v1114 = vunpack.c.l.b16 %v1096
      %v1115 = vunpack.c.h.b16 %v1096
      %v1116 = vunpack.c.l.b16 %v1097
      %v1117 = vunpack.c.h.b16 %v1097
      %v1118 = vunpack.c.l.b16 %v1098
      %v1119 = vunpack.c.h.b16 %v1098
      %v1120 = vunpack.c.l.b16 %v1099
      %v1121 = vunpack.c.h.b16 %v1099
      %v1122 = vunpack.c.l.b16 %v1100
      %v1123 = vunpack.c.h.b16 %v1100
      %v1124 = vunpack.c.l.b16 %v1101
      %v1125 = vunpack.c.h.b16 %v1101
      %v1126 = vpack.c.b16 %v1112, %v1110
      %v1127 = vpack.c.b16 %v1113, %v1111
      %v1128 = vpack.c.b16 %v1116, %v1114
      %v1129 = vpack.c.b16 %v1117, %v1115
      %v1130 = vpack.c.b16 %v1120, %v1118
      %v1131 = vpack.c.b16 %v1121, %v1119
      %v1132 = vpack.c.b16 %v1124, %v1122
      %v1133 = vpack.c.b16 %v1125, %v1123
      %vm1142 = vcmask 523264
      %v1144 = vsel %vm1142, %v1090, 0
      %1146 = vmatprep.subr.bf16.mxu0 %v1127
      %1147 = vmatpush1.bf16.msra.mxu0 %v1126
      %1148 = vmatprep.subr.bf16.mxu0 %v1129
      %1149 = vmatpush1.bf16.msra.mxu0 %v1128
      %1150 = vmatprep.subr.bf16.mxu0 %v1131
      %1151 = vmatpush1.bf16.msra.mxu0 %v1130
      %1152 = vmatprep.subr.bf16.mxu0 %v1133
      %1153 = vmatpush1.bf16.msra.mxu0 %v1132
      %1154 = vmatprep.subr.bf16.mxu0 0
      %1155 = vmatpush1.bf16.msra.mxu0 0
      %1156 = vmatprep.subr.bf16.mxu0 0
      %1157 = vmatpush1.bf16.msra.mxu0 0
      %1158 = vmatprep.subr.bf16.mxu0 0
      %1159 = vmatpush1.bf16.msra.mxu0 0
      %1160 = vmatprep.subr.bf16.mxu0 0
      %1161 = vmatpush1.bf16.msra.mxu0 0
      %1162 = vmatprep.subr.bf16.mxu0 0
      %1163 = vmatpush1.bf16.msra.mxu0 0
      %1164 = vmatprep.subr.bf16.mxu0 0
      %1165 = vmatpush1.bf16.msra.mxu0 0
      %1166 = vmatprep.subr.bf16.mxu0 0
      %1167 = vmatpush1.bf16.msra.mxu0 0
      %1168 = vmatprep.subr.bf16.mxu0 0
      %1169 = vmatpush1.bf16.msra.mxu0 0
      %1170 = vmatprep.subr.bf16.mxu0 0
      %1171 = vmatpush1.bf16.msra.mxu0 0
      %1172 = vmatprep.subr.bf16.mxu0 0
      %1173 = vmatpush1.bf16.msra.mxu0 0
      %1174 = vmatprep.subr.bf16.mxu0 0
      %1175 = vmatpush1.bf16.msra.mxu0 0
      %1176 = vmatprep.subr.bf16.mxu0 0
      %1177 = vmatpush1.bf16.msra.mxu0 0
      %1178 = vmatprep.mubr.bf16.mxu0 0
      %1179 = vmatmul.mubr.bf16.gmra.mrb[0].mxu0 %v1144
      %v1180 = vpop.f32.mrb[0].mxu0
      %v1181 = vadd.f32 0.0, %v1180
      %v1182 = vpop.f32.mrb[0].mxu0
      %v1183 = vadd.f32 0.0, %v1182
      %v1184 = vpop.f32.mrb[0].mxu0
      %v1185 = vpop.f32.mrb[0].mxu0
      %1186 = vdwg.mxu0
      %vm1187 = vcmask 64512
      %v1189 = vsel %vm1187, %v1004, 0
      %v1192 = vsel %vm1187, %v1005, 0
      %v1195 = vsel %vm1187, %v1006, 0
      %v1198 = vsel %vm1187, %v1007, 0
      %v1201 = vsel %vm1187, %v1008, 0
      %v1204 = vsel %vm1187, %v1009, 0
      %v1207 = vsel %vm1187, %v1010, 0
      %v1210 = vsel %vm1187, %v1011, 0
      %v1213 = vsel %vm1187, %v1012, 0
      %v1216 = vsel %vm1187, %v1013, 0
      %v1219 = vsel %vm1187, %v1014, 0
      %v1222 = vsel %vm1187, %v1015, 0
      %v1225 = vsel %vm1187, %v1016, 0
      %v1228 = vsel %vm1187, %v1017, 0
      %v1231 = vsel %vm1187, %v1018, 0
      %v1234 = vsel %vm1187, %v1019, 0
      %1236 = vmatprep.subr.mxu0 %v1183
      %1237 = vmatpush1.msra.mxu0 %v1181
      %1238 = vmatprep.subr.mxu0 0.0
      %1239 = vmatpush1.msra.mxu0 0.0
      %1240 = vmatprep.subr.mxu0 0.0
      %1241 = vmatpush1.msra.mxu0 0.0
      %1242 = vmatprep.subr.mxu0 0.0
      %1243 = vmatpush1.msra.mxu0 0.0
      %1244 = vmatprep.subr.mxu0 0.0
      %1245 = vmatpush1.msra.mxu0 0.0
      %1246 = vmatprep.subr.mxu0 0.0
      %1247 = vmatpush1.msra.mxu0 0.0
      %1248 = vmatprep.subr.mxu0 0.0
      %1249 = vmatpush1.msra.mxu0 0.0
      %1250 = vmatprep.subr.mxu0 0.0
      %1251 = vmatpush1.msra.mxu0 0.0
      %1252 = vmatprep.subr.mxu0 0.0
      %1253 = vmatpush1.msra.mxu0 0.0
      %1254 = vmatprep.subr.mxu0 0.0
      %1255 = vmatpush1.msra.mxu0 0.0
      %1256 = vmatprep.subr.mxu0 0.0
      %1257 = vmatpush1.msra.mxu0 0.0
      %1258 = vmatprep.subr.mxu0 0.0
      %1259 = vmatpush1.msra.mxu0 0.0
      %1260 = vmatprep.subr.mxu0 0.0
      %1261 = vmatpush1.msra.mxu0 0.0
      %1262 = vmatprep.subr.mxu0 0.0
      %1263 = vmatpush1.msra.mxu0 0.0
      %1264 = vmatprep.subr.mxu0 0.0
      %1265 = vmatpush1.msra.mxu0 0.0
      %1266 = vmatprep.subr.mxu0 0.0
      %1267 = vmatpush1.msra.mxu0 0.0
      %1268 = vmatprep.subr.mxu0 0.0
      %1269 = vmatpush1.msra.mxu0 0.0
      %1270 = vmatprep.subr.mxu0 0.0
      %1271 = vmatpush1.msra.mxu0 0.0
      %1272 = vmatprep.subr.mxu0 0.0
      %1273 = vmatpush1.msra.mxu0 0.0
      %1274 = vmatprep.subr.mxu0 0.0
      %1275 = vmatpush1.msra.mxu0 0.0
      %1276 = vmatprep.subr.mxu0 0.0
      %1277 = vmatpush1.msra.mxu0 0.0
      %1278 = vmatprep.subr.mxu0 0.0
      %1279 = vmatpush1.msra.mxu0 0.0
      %1280 = vmatprep.subr.mxu0 0.0
      %1281 = vmatpush1.msra.mxu0 0.0
      %1282 = vmatprep.subr.mxu0 0.0
      %1283 = vmatpush1.msra.mxu0 0.0
      %1284 = vmatprep.subr.mxu0 0.0
      %1285 = vmatpush1.msra.mxu0 0.0
      %1286 = vmatprep.subr.mxu0 0.0
      %1287 = vmatpush1.msra.mxu0 0.0
      %1288 = vmatprep.subr.mxu0 0.0
      %1289 = vmatpush1.msra.mxu0 0.0
      %1290 = vmatprep.subr.mxu0 0.0
      %1291 = vmatpush1.msra.mxu0 0.0
      %1292 = vmatprep.subr.mxu0 0.0
      %1293 = vmatpush1.msra.mxu0 0.0
      %1294 = vmatprep.subr.mxu0 0.0
      %1295 = vmatpush1.msra.mxu0 0.0
      %1296 = vmatprep.subr.mxu0 0.0
      %1297 = vmatpush1.msra.mxu0 0.0
      %1298 = vmatprep.subr.mxu0 0.0
      %1299 = vmatpush1.msra.mxu0 0.0
      %1300 = vmatprep.mubr.f32.mxu0 0.0
      %1301 = vmatmul.mubr.f32.gmra.mrb[0].mxu0 %v1189
      %v1302 = vpop.f32.mrb[0].mxu0
      %v1303 = vadd.f32 0.0, %v1302
      %v1304 = vpop.f32.mrb[0].mxu0
      %v1305 = vadd.f32 0.0, %v1304
      %1306 = vmatprep.mubr.f32.mxu0 0.0
      %1307 = vmatmul.mubr.f32.gmra.mrb[0].mxu0 %v1192
      %v1308 = vpop.f32.mrb[0].mxu0
      %v1309 = vadd.f32 0.0, %v1308
      %v1310 = vpop.f32.mrb[0].mxu0
      %v1311 = vadd.f32 0.0, %v1310
      %1312 = vmatprep.mubr.f32.mxu0 0.0
      %1313 = vmatmul.mubr.f32.gmra.mrb[0].mxu0 %v1195
      %v1314 = vpop.f32.mrb[0].mxu0
      %v1315 = vadd.f32 0.0, %v1314
      %v1316 = vpop.f32.mrb[0].mxu0
      %v1317 = vadd.f32 0.0, %v1316
      %1318 = vmatprep.mubr.f32.mxu0 0.0
      %1319 = vmatmul.mubr.f32.gmra.mrb[0].mxu0 %v1198
      %v1320 = vpop.f32.mrb[0].mxu0
      %v1321 = vadd.f32 0.0, %v1320
      %v1322 = vpop.f32.mrb[0].mxu0
      %v1323 = vadd.f32 0.0, %v1322
      %1324 = vmatprep.mubr.f32.mxu0 0.0
      %1325 = vmatmul.mubr.f32.gmra.mrb[0].mxu0 %v1201
      %v1326 = vpop.f32.mrb[0].mxu0
      %v1327 = vadd.f32 0.0, %v1326
      %v1328 = vpop.f32.mrb[0].mxu0
      %v1329 = vadd.f32 0.0, %v1328
      %1330 = vmatprep.mubr.f32.mxu0 0.0
      %1331 = vmatmul.mubr.f32.gmra.mrb[0].mxu0 %v1204
      %v1332 = vpop.f32.mrb[0].mxu0
      %v1333 = vadd.f32 0.0, %v1332
      %v1334 = vpop.f32.mrb[0].mxu0
      %v1335 = vadd.f32 0.0, %v1334
      %1336 = vmatprep.mubr.f32.mxu0 0.0
      %1337 = vmatmul.mubr.f32.gmra.mrb[0].mxu0 %v1207
      %v1338 = vpop.f32.mrb[0].mxu0
      %v1339 = vadd.f32 0.0, %v1338
      %v1340 = vpop.f32.mrb[0].mxu0
      %v1341 = vadd.f32 0.0, %v1340
      %1342 = vmatprep.mubr.f32.mxu0 0.0
      %1343 = vmatmul.mubr.f32.gmra.mrb[0].mxu0 %v1210
      %v1344 = vpop.f32.mrb[0].mxu0
      %v1345 = vadd.f32 0.0, %v1344
      %v1346 = vpop.f32.mrb[0].mxu0
      %v1347 = vadd.f32 0.0, %v1346
      %1348 = vmatprep.mubr.f32.mxu0 0.0
      %1349 = vmatmul.mubr.f32.gmra.mrb[0].mxu0 %v1213
      %v1350 = vpop.f32.mrb[0].mxu0
      %v1351 = vadd.f32 0.0, %v1350
      %v1352 = vpop.f32.mrb[0].mxu0
      %v1353 = vadd.f32 0.0, %v1352
      %1354 = vmatprep.mubr.f32.mxu0 0.0
      %1355 = vmatmul.mubr.f32.gmra.mrb[0].mxu0 %v1216
      %v1356 = vpop.f32.mrb[0].mxu0
      %v1357 = vadd.f32 0.0, %v1356
      %v1358 = vpop.f32.mrb[0].mxu0
      %v1359 = vadd.f32 0.0, %v1358
      %1360 = vmatprep.mubr.f32.mxu0 0.0
      %1361 = vmatmul.mubr.f32.gmra.mrb[0].mxu0 %v1219
      %v1362 = vpop.f32.mrb[0].mxu0
      %v1363 = vadd.f32 0.0, %v1362
      %v1364 = vpop.f32.mrb[0].mxu0
      %v1365 = vadd.f32 0.0, %v1364
      %1366 = vmatprep.mubr.f32.mxu0 0.0
      %1367 = vmatmul.mubr.f32.gmra.mrb[0].mxu0 %v1222
      %v1368 = vpop.f32.mrb[0].mxu0
      %v1369 = vadd.f32 0.0, %v1368
      %v1370 = vpop.f32.mrb[0].mxu0
      %v1371 = vadd.f32 0.0, %v1370
      %1372 = vmatprep.mubr.f32.mxu0 0.0
      %1373 = vmatmul.mubr.f32.gmra.mrb[0].mxu0 %v1225
      %v1374 = vpop.f32.mrb[0].mxu0
      %v1375 = vadd.f32 0.0, %v1374
      %v1376 = vpop.f32.mrb[0].mxu0
      %v1377 = vadd.f32 0.0, %v1376
      %1378 = vmatprep.mubr.f32.mxu0 0.0
      %1379 = vmatmul.mubr.f32.gmra.mrb[0].mxu0 %v1228
      %v1380 = vpop.f32.mrb[0].mxu0
      %v1381 = vadd.f32 0.0, %v1380
      %v1382 = vpop.f32.mrb[0].mxu0
      %v1383 = vadd.f32 0.0, %v1382
      %1384 = vmatprep.mubr.f32.mxu0 0.0
      %1385 = vmatmul.mubr.f32.gmra.mrb[0].mxu0 %v1231
      %v1386 = vpop.f32.mrb[0].mxu0
      %v1387 = vadd.f32 0.0, %v1386
      %v1388 = vpop.f32.mrb[0].mxu0
      %v1389 = vadd.f32 0.0, %v1388
      %1390 = vmatprep.mubr.f32.mxu0 0.0
      %1391 = vmatmul.mubr.f32.gmra.mrb[0].mxu0 %v1234
      %v1392 = vpop.f32.mrb[0].mxu0
      %v1393 = vadd.f32 0.0, %v1392
      %v1394 = vpop.f32.mrb[0].mxu0
      %v1395 = vadd.f32 0.0, %v1394
      %1396 = vdwg.mxu0
      %v1397 = vadd.f32 %v882, %v1303
      %v1398 = vadd.f32 %v883, %v1305
      %v1399 = vadd.f32 %v884, %v1309
      %v1400 = vadd.f32 %v885, %v1311
      %v1401 = vadd.f32 %v886, %v1315
      %v1402 = vadd.f32 %v887, %v1317
      %v1403 = vadd.f32 %v888, %v1321
      %v1404 = vadd.f32 %v889, %v1323
      %v1405 = vadd.f32 %v890, %v1327
      %v1406 = vadd.f32 %v891, %v1329
      %v1407 = vadd.f32 %v892, %v1333
      %v1408 = vadd.f32 %v893, %v1335
      %v1409 = vadd.f32 %v894, %v1339
      %v1410 = vadd.f32 %v895, %v1341
      %v1411 = vadd.f32 %v896, %v1345
      %v1412 = vadd.f32 %v897, %v1347
      %v1413 = vadd.f32 %v898, %v1351
      %v1414 = vadd.f32 %v899, %v1353
      %v1415 = vadd.f32 %v900, %v1357
      %v1416 = vadd.f32 %v901, %v1359
      %v1417 = vadd.f32 %v902, %v1363
      %v1418 = vadd.f32 %v903, %v1365
      %v1419 = vadd.f32 %v904, %v1369
      %v1420 = vadd.f32 %v905, %v1371
      %v1421 = vadd.f32 %v906, %v1375
      %v1422 = vadd.f32 %v907, %v1377
      %v1423 = vadd.f32 %v908, %v1381
      %v1424 = vadd.f32 %v909, %v1383
      %v1425 = vadd.f32 %v910, %v1387
      %v1426 = vadd.f32 %v911, %v1389
      %v1427 = vadd.f32 %v912, %v1393
      %v1428 = vadd.f32 %v913, %v1395
    $region101: #{tpu_custom_call.1} parent=1 // loop_footer
      %s881 = sadd.s32 1, %s877
    $region102: #{tpu_custom_call.1} parent=1 // loop_footer_branch
      %876 = sbr.rel target = $region98
    $region103: #{tpu_custom_call.1} parent=1 // loop_exit
      _
    %v1429 = vld [vmem:[%s13] sm:$0x3]
    %v1431 = vlaneseq
    %v1432 = vshrl.u32 %v1431, 7
    %v1433 = vsub.s32 0, %v1432
    %v1434 = vrot.slane %v1429, %v1433
    %v1435 = vlaneseq
    %v1436 = vshrl.u32 %v1435, 7
    %v1437 = vsub.s32 1, %v1436
    %v1438 = vrot.slane %v1429, %v1437
    %v1441 = vadd.f32 %v882, %v1434
    %v1442 = vadd.f32 %v883, %v1438
    %v1443 = vadd.f32 %v884, %v1434
    %v1444 = vadd.f32 %v885, %v1438
    %v1445 = vadd.f32 %v886, %v1434
    %v1446 = vadd.f32 %v887, %v1438
    %v1447 = vadd.f32 %v888, %v1434
    %v1448 = vadd.f32 %v889, %v1438
    %v1449 = vadd.f32 %v890, %v1434
    %v1450 = vadd.f32 %v891, %v1438
    %v1451 = vadd.f32 %v892, %v1434
    %v1452 = vadd.f32 %v893, %v1438
    %v1453 = vadd.f32 %v894, %v1434
    %v1454 = vadd.f32 %v895, %v1438
    %v1455 = vadd.f32 %v896, %v1434
    %v1456 = vadd.f32 %v897, %v1438
    %v1457 = vadd.f32 %v898, %v1434
    %v1458 = vadd.f32 %v899, %v1438
    %v1459 = vadd.f32 %v900, %v1434
    %v1460 = vadd.f32 %v901, %v1438
    %v1461 = vadd.f32 %v902, %v1434
    %v1462 = vadd.f32 %v903, %v1438
    %v1463 = vadd.f32 %v904, %v1434
    %v1464 = vadd.f32 %v905, %v1438
    %v1465 = vadd.f32 %v906, %v1434
    %v1466 = vadd.f32 %v907, %v1438
    %v1467 = vadd.f32 %v908, %v1434
    %v1468 = vadd.f32 %v909, %v1438
    %v1469 = vadd.f32 %v910, %v1434
    %v1470 = vadd.f32 %v911, %v1438
    %v1471 = vadd.f32 %v912, %v1434
    %v1472 = vadd.f32 %v913, %v1438
    %v1473 = vmax.f32 %v1441, 0.0
    %v1474 = vmax.f32 %v1442, 0.0
    %v1475 = vmax.f32 %v1443, 0.0
    %v1476 = vmax.f32 %v1444, 0.0
    %v1477 = vmax.f32 %v1445, 0.0
    %v1478 = vmax.f32 %v1446, 0.0
    %v1479 = vmax.f32 %v1447, 0.0
    %v1480 = vmax.f32 %v1448, 0.0
    %v1481 = vmax.f32 %v1449, 0.0
    %v1482 = vmax.f32 %v1450, 0.0
    %v1483 = vmax.f32 %v1451, 0.0
    %v1484 = vmax.f32 %v1452, 0.0
    %v1485 = vmax.f32 %v1453, 0.0
    %v1486 = vmax.f32 %v1454, 0.0
    %v1487 = vmax.f32 %v1455, 0.0
    %v1488 = vmax.f32 %v1456, 0.0
    %v1489 = vmax.f32 %v1457, 0.0
    %v1490 = vmax.f32 %v1458, 0.0
    %v1491 = vmax.f32 %v1459, 0.0
    %v1492 = vmax.f32 %v1460, 0.0
    %v1493 = vmax.f32 %v1461, 0.0
    %v1494 = vmax.f32 %v1462, 0.0
    %v1495 = vmax.f32 %v1463, 0.0
    %v1496 = vmax.f32 %v1464, 0.0
    %v1497 = vmax.f32 %v1465, 0.0
    %v1498 = vmax.f32 %v1466, 0.0
    %v1499 = vmax.f32 %v1467, 0.0
    %v1500 = vmax.f32 %v1468, 0.0
    %v1501 = vmax.f32 %v1469, 0.0
    %v1502 = vmax.f32 %v1470, 0.0
    %v1503 = vmax.f32 %v1471, 0.0
    %v1504 = vmax.f32 %v1472, 0.0
    %v1505 = vld [vmem:[#allocation8] sm:$0xff]
    %v1506 = vld [vmem:[#allocation8 + $0x8] sm:$0xff]
    %v1507 = vld [vmem:[#allocation8 + $0x10] sm:$0xff]
    %v1508 = vld [vmem:[#allocation8 + $0x18] sm:$0xff]
    %v1509 = vld [vmem:[#allocation8 + $0x20] sm:$0xff]
    %v1510 = vld [vmem:[#allocation8 + $0x28] sm:$0xff]
    %v1511 = vld [vmem:[#allocation8 + $0x30] sm:$0xff]
    %v1512 = vld [vmem:[#allocation8 + $0x38] sm:$0xff]
    %v1513 = vld [vmem:[%s14] sm:$0x3]
    %v1515 = vlaneseq
    %v1516 = vshrl.u32 %v1515, 7
    %v1517 = vsub.s32 0, %v1516
    %v1518 = vrot.slane %v1513, %v1517
    %v1519 = vlaneseq
    %v1520 = vshrl.u32 %v1519, 7
    %v1521 = vsub.s32 1, %v1520
    %v1522 = vrot.slane %v1513, %v1521
    %v1533 = vunpack.c.l.b16 %v1505
    %v1534 = vunpack.c.h.b16 %v1505
    %v1535 = vunpack.c.l.b16 %v1506
    %v1536 = vunpack.c.h.b16 %v1506
    %v1537 = vunpack.c.l.b16 %v1507
    %v1538 = vunpack.c.h.b16 %v1507
    %v1539 = vunpack.c.l.b16 %v1508
    %v1540 = vunpack.c.h.b16 %v1508
    %v1541 = vunpack.c.l.b16 %v1509
    %v1542 = vunpack.c.h.b16 %v1509
    %v1543 = vunpack.c.l.b16 %v1510
    %v1544 = vunpack.c.h.b16 %v1510
    %v1545 = vunpack.c.l.b16 %v1511
    %v1546 = vunpack.c.h.b16 %v1511
    %v1547 = vunpack.c.l.b16 %v1512
    %v1548 = vunpack.c.h.b16 %v1512
    %v1549 = vpack.c.b16 %v1535, %v1533
    %v1550 = vpack.c.b16 %v1536, %v1534
    %v1551 = vpack.c.b16 %v1539, %v1537
    %v1552 = vpack.c.b16 %v1540, %v1538
    %v1553 = vpack.c.b16 %v1543, %v1541
    %v1554 = vpack.c.b16 %v1544, %v1542
    %v1555 = vpack.c.b16 %v1547, %v1545
    %v1556 = vpack.c.b16 %v1548, %v1546
    %vm1565 = vcmask 523264
    %v1567 = vsel %vm1565, %v868, 0
    %v1570 = vsel %vm1565, %v869, 0
    %v1573 = vsel %vm1565, %v870, 0
    %v1576 = vsel %vm1565, %v871, 0
    %v1579 = vsel %vm1565, %v872, 0
    %v1582 = vsel %vm1565, %v873, 0
    %v1585 = vsel %vm1565, %v874, 0
    %v1588 = vsel %vm1565, %v875, 0
    %1590 = vmatprep.subr.bf16.mxu0 %v1550
    %1591 = vmatpush1.bf16.msra.mxu0 %v1549
    %1592 = vmatprep.subr.bf16.mxu0 %v1552
    %1593 = vmatpush1.bf16.msra.mxu0 %v1551
    %1594 = vmatprep.subr.bf16.mxu0 %v1554
    %1595 = vmatpush1.bf16.msra.mxu0 %v1553
    %1596 = vmatprep.subr.bf16.mxu0 %v1556
    %1597 = vmatpush1.bf16.msra.mxu0 %v1555
    %1598 = vmatprep.subr.bf16.mxu0 0
    %1599 = vmatpush1.bf16.msra.mxu0 0
    %1600 = vmatprep.subr.bf16.mxu0 0
    %1601 = vmatpush1.bf16.msra.mxu0 0
    %1602 = vmatprep.subr.bf16.mxu0 0
    %1603 = vmatpush1.bf16.msra.mxu0 0
    %1604 = vmatprep.subr.bf16.mxu0 0
    %1605 = vmatpush1.bf16.msra.mxu0 0
    %1606 = vmatprep.subr.bf16.mxu0 0
    %1607 = vmatpush1.bf16.msra.mxu0 0
    %1608 = vmatprep.subr.bf16.mxu0 0
    %1609 = vmatpush1.bf16.msra.mxu0 0
    %1610 = vmatprep.subr.bf16.mxu0 0
    %1611 = vmatpush1.bf16.msra.mxu0 0
    %1612 = vmatprep.subr.bf16.mxu0 0
    %1613 = vmatpush1.bf16.msra.mxu0 0
    %1614 = vmatprep.subr.bf16.mxu0 0
    %1615 = vmatpush1.bf16.msra.mxu0 0
    %1616 = vmatprep.subr.bf16.mxu0 0
    %1617 = vmatpush1.bf16.msra.mxu0 0
    %1618 = vmatprep.subr.bf16.mxu0 0
    %1619 = vmatpush1.bf16.msra.mxu0 0
    %1620 = vmatprep.subr.bf16.mxu0 0
    %1621 = vmatpush1.bf16.msra.mxu0 0
    %1622 = vmatprep.mubr.bf16.mxu0 0
    %1623 = vmatmul.mubr.bf16.gmra.mrb[0].mxu0 %v1567
    %v1624 = vpop.f32.mrb[0].mxu0
    %v1625 = vadd.f32 %v1518, %v1624
    %v1626 = vpop.f32.mrb[0].mxu0
    %v1627 = vadd.f32 %v1522, %v1626
    %v1628 = vpop.f32.mrb[0].mxu0
    %v1629 = vadd.f32 %v1518, %v1628
    %v1630 = vpop.f32.mrb[0].mxu0
    %v1631 = vadd.f32 %v1522, %v1630
    %1632 = vmatprep.mubr.bf16.mxu0 0
    %1633 = vmatmul.mubr.bf16.gmra.mrb[0].mxu0 %v1570
    %v1634 = vpop.f32.mrb[0].mxu0
    %v1635 = vadd.f32 %v1518, %v1634
    %v1636 = vpop.f32.mrb[0].mxu0
    %v1637 = vadd.f32 %v1522, %v1636
    %v1638 = vpop.f32.mrb[0].mxu0
    %v1639 = vadd.f32 %v1518, %v1638
    %v1640 = vpop.f32.mrb[0].mxu0
    %v1641 = vadd.f32 %v1522, %v1640
    %1642 = vmatprep.mubr.bf16.mxu0 0
    %1643 = vmatmul.mubr.bf16.gmra.mrb[0].mxu0 %v1573
    %v1644 = vpop.f32.mrb[0].mxu0
    %v1645 = vadd.f32 %v1518, %v1644
    %v1646 = vpop.f32.mrb[0].mxu0
    %v1647 = vadd.f32 %v1522, %v1646
    %v1648 = vpop.f32.mrb[0].mxu0
    %v1649 = vadd.f32 %v1518, %v1648
    %v1650 = vpop.f32.mrb[0].mxu0
    %v1651 = vadd.f32 %v1522, %v1650
    %1652 = vmatprep.mubr.bf16.mxu0 0
    %1653 = vmatmul.mubr.bf16.gmra.mrb[0].mxu0 %v1576
    %v1654 = vpop.f32.mrb[0].mxu0
    %v1655 = vadd.f32 %v1518, %v1654
    %v1656 = vpop.f32.mrb[0].mxu0
    %v1657 = vadd.f32 %v1522, %v1656
    %v1658 = vpop.f32.mrb[0].mxu0
    %v1659 = vadd.f32 %v1518, %v1658
    %v1660 = vpop.f32.mrb[0].mxu0
    %v1661 = vadd.f32 %v1522, %v1660
    %1662 = vmatprep.mubr.bf16.mxu0 0
    %1663 = vmatmul.mubr.bf16.gmra.mrb[0].mxu0 %v1579
    %v1664 = vpop.f32.mrb[0].mxu0
    %v1665 = vadd.f32 %v1518, %v1664
    %v1666 = vpop.f32.mrb[0].mxu0
    %v1667 = vadd.f32 %v1522, %v1666
    %v1668 = vpop.f32.mrb[0].mxu0
    %v1669 = vadd.f32 %v1518, %v1668
    %v1670 = vpop.f32.mrb[0].mxu0
    %v1671 = vadd.f32 %v1522, %v1670
    %1672 = vmatprep.mubr.bf16.mxu0 0
    %1673 = vmatmul.mubr.bf16.gmra.mrb[0].mxu0 %v1582
    %v1674 = vpop.f32.mrb[0].mxu0
    %v1675 = vadd.f32 %v1518, %v1674
    %v1676 = vpop.f32.mrb[0].mxu0
    %v1677 = vadd.f32 %v1522, %v1676
    %v1678 = vpop.f32.mrb[0].mxu0
    %v1679 = vadd.f32 %v1518, %v1678
    %v1680 = vpop.f32.mrb[0].mxu0
    %v1681 = vadd.f32 %v1522, %v1680
    %1682 = vmatprep.mubr.bf16.mxu0 0
    %1683 = vmatmul.mubr.bf16.gmra.mrb[0].mxu0 %v1585
    %v1684 = vpop.f32.mrb[0].mxu0
    %v1685 = vadd.f32 %v1518, %v1684
    %v1686 = vpop.f32.mrb[0].mxu0
    %v1687 = vadd.f32 %v1522, %v1686
    %v1688 = vpop.f32.mrb[0].mxu0
    %v1689 = vadd.f32 %v1518, %v1688
    %v1690 = vpop.f32.mrb[0].mxu0
    %v1691 = vadd.f32 %v1522, %v1690
    %1692 = vmatprep.mubr.bf16.mxu0 0
    %1693 = vmatmul.mubr.bf16.gmra.mrb[0].mxu0 %v1588
    %v1694 = vpop.f32.mrb[0].mxu0
    %v1695 = vadd.f32 %v1518, %v1694
    %v1696 = vpop.f32.mrb[0].mxu0
    %v1697 = vadd.f32 %v1522, %v1696
    %v1698 = vpop.f32.mrb[0].mxu0
    %v1699 = vadd.f32 %v1518, %v1698
    %v1700 = vpop.f32.mrb[0].mxu0
    %v1701 = vadd.f32 %v1522, %v1700
    %1702 = vdwg.mxu0
    %v1703 = vmax.f32 %v1625, 0.0
    %v1704 = vmax.f32 %v1627, 0.0
    %v1705 = vmax.f32 %v1629, 0.0
    %v1706 = vmax.f32 %v1631, 0.0
    %v1707 = vmax.f32 %v1635, 0.0
    %v1708 = vmax.f32 %v1637, 0.0
    %v1709 = vmax.f32 %v1639, 0.0
    %v1710 = vmax.f32 %v1641, 0.0
    %v1711 = vmax.f32 %v1645, 0.0
    %v1712 = vmax.f32 %v1647, 0.0
    %v1713 = vmax.f32 %v1649, 0.0
    %v1714 = vmax.f32 %v1651, 0.0
    %v1715 = vmax.f32 %v1655, 0.0
    %v1716 = vmax.f32 %v1657, 0.0
    %v1717 = vmax.f32 %v1659, 0.0
    %v1718 = vmax.f32 %v1661, 0.0
    %v1719 = vmax.f32 %v1665, 0.0
    %v1720 = vmax.f32 %v1667, 0.0
    %v1721 = vmax.f32 %v1669, 0.0
    %v1722 = vmax.f32 %v1671, 0.0
    %v1723 = vmax.f32 %v1675, 0.0
    %v1724 = vmax.f32 %v1677, 0.0
    %v1725 = vmax.f32 %v1679, 0.0
    %v1726 = vmax.f32 %v1681, 0.0
    %v1727 = vmax.f32 %v1685, 0.0
    %v1728 = vmax.f32 %v1687, 0.0
    %v1729 = vmax.f32 %v1689, 0.0
    %v1730 = vmax.f32 %v1691, 0.0
    %v1731 = vmax.f32 %v1695, 0.0
    %v1732 = vmax.f32 %v1697, 0.0
    %v1733 = vmax.f32 %v1699, 0.0
    %v1734 = vmax.f32 %v1701, 0.0
    %v1735 = vadd.f32 %v1473, %v1703
    %v1736 = vadd.f32 %v1474, %v1704
    %v1737 = vadd.f32 %v1475, %v1705
    %v1738 = vadd.f32 %v1476, %v1706
    %v1739 = vadd.f32 %v1477, %v1707
    %v1740 = vadd.f32 %v1478, %v1708
    %v1741 = vadd.f32 %v1479, %v1709
    %v1742 = vadd.f32 %v1480, %v1710
    %v1743 = vadd.f32 %v1481, %v1711
    %v1744 = vadd.f32 %v1482, %v1712
    %v1745 = vadd.f32 %v1483, %v1713
    %v1746 = vadd.f32 %v1484, %v1714
    %v1747 = vadd.f32 %v1485, %v1715
    %v1748 = vadd.f32 %v1486, %v1716
    %v1749 = vadd.f32 %v1487, %v1717
    %v1750 = vadd.f32 %v1488, %v1718
    %v1751 = vadd.f32 %v1489, %v1719
    %v1752 = vadd.f32 %v1490, %v1720
    %v1753 = vadd.f32 %v1491, %v1721
    %v1754 = vadd.f32 %v1492, %v1722
    %v1755 = vadd.f32 %v1493, %v1723
    %v1756 = vadd.f32 %v1494, %v1724
    %v1757 = vadd.f32 %v1495, %v1725
    %v1758 = vadd.f32 %v1496, %v1726
    %v1759 = vadd.f32 %v1497, %v1727
    %v1760 = vadd.f32 %v1498, %v1728
    %v1761 = vadd.f32 %v1499, %v1729
    %v1762 = vadd.f32 %v1500, %v1730
    %v1763 = vadd.f32 %v1501, %v1731
    %v1764 = vadd.f32 %v1502, %v1732
    %v1765 = vadd.f32 %v1503, %v1733
    %v1766 = vadd.f32 %v1504, %v1734
    %v1767 = vld [vmem:[%s15] sm:$0x3]
    %v1769 = vlaneseq
    %v1770 = vshrl.u32 %v1769, 7
    %v1771 = vsub.s32 0, %v1770
    %v1772 = vrot.slane %v1767, %v1771
    %v1773 = vlaneseq
    %v1774 = vshrl.u32 %v1773, 7
    %v1775 = vsub.s32 1, %v1774
    %v1776 = vrot.slane %v1767, %v1775
    %v1779 = vmul.f32 %v1735, %v1772
    %v1780 = vmul.f32 %v1736, %v1776
    %v1781 = vmul.f32 %v1737, %v1772
    %v1782 = vmul.f32 %v1738, %v1776
    %v1783 = vmul.f32 %v1739, %v1772
    %v1784 = vmul.f32 %v1740, %v1776
    %v1785 = vmul.f32 %v1741, %v1772
    %v1786 = vmul.f32 %v1742, %v1776
    %v1787 = vmul.f32 %v1743, %v1772
    %v1788 = vmul.f32 %v1744, %v1776
    %v1789 = vmul.f32 %v1745, %v1772
    %v1790 = vmul.f32 %v1746, %v1776
    %v1791 = vmul.f32 %v1747, %v1772
    %v1792 = vmul.f32 %v1748, %v1776
    %v1793 = vmul.f32 %v1749, %v1772
    %v1794 = vmul.f32 %v1750, %v1776
    %v1795 = vmul.f32 %v1751, %v1772
    %v1796 = vmul.f32 %v1752, %v1776
    %v1797 = vmul.f32 %v1753, %v1772
    %v1798 = vmul.f32 %v1754, %v1776
    %v1799 = vmul.f32 %v1755, %v1772
    %v1800 = vmul.f32 %v1756, %v1776
    %v1801 = vmul.f32 %v1757, %v1772
    %v1802 = vmul.f32 %v1758, %v1776
    %v1803 = vmul.f32 %v1759, %v1772
    %v1804 = vmul.f32 %v1760, %v1776
    %v1805 = vmul.f32 %v1761, %v1772
    %v1806 = vmul.f32 %v1762, %v1776
    %v1807 = vmul.f32 %v1763, %v1772
    %v1808 = vmul.f32 %v1764, %v1776
    %v1809 = vmul.f32 %v1765, %v1772
    %v1810 = vmul.f32 %v1766, %v1776
    %v1811 = vld [vmem:[%s16] sm:$0x3]
    %v1813 = vlaneseq
    %v1814 = vshrl.u32 %v1813, 7
    %v1815 = vsub.s32 0, %v1814
    %v1816 = vrot.slane %v1811, %v1815
    %v1817 = vlaneseq
    %v1818 = vshrl.u32 %v1817, 7
    %v1819 = vsub.s32 1, %v1818
    %v1820 = vrot.slane %v1811, %v1819
    %v1823 = vadd.f32 %v1779, %v1816
    %v1824 = vadd.f32 %v1780, %v1820
    %v1825 = vadd.f32 %v1781, %v1816
    %v1826 = vadd.f32 %v1782, %v1820
    %v1827 = vadd.f32 %v1783, %v1816
    %v1828 = vadd.f32 %v1784, %v1820
    %v1829 = vadd.f32 %v1785, %v1816
    %v1830 = vadd.f32 %v1786, %v1820
    %v1831 = vadd.f32 %v1787, %v1816
    %v1832 = vadd.f32 %v1788, %v1820
    %v1833 = vadd.f32 %v1789, %v1816
    %v1834 = vadd.f32 %v1790, %v1820
    %v1835 = vadd.f32 %v1791, %v1816
    %v1836 = vadd.f32 %v1792, %v1820
    %v1837 = vadd.f32 %v1793, %v1816
    %v1838 = vadd.f32 %v1794, %v1820
    %v1839 = vadd.f32 %v1795, %v1816
    %v1840 = vadd.f32 %v1796, %v1820
    %v1841 = vadd.f32 %v1797, %v1816
    %v1842 = vadd.f32 %v1798, %v1820
    %v1843 = vadd.f32 %v1799, %v1816
    %v1844 = vadd.f32 %v1800, %v1820
    %v1845 = vadd.f32 %v1801, %v1816
    %v1846 = vadd.f32 %v1802, %v1820
    %v1847 = vadd.f32 %v1803, %v1816
    %v1848 = vadd.f32 %v1804, %v1820
    %v1849 = vadd.f32 %v1805, %v1816
    %v1850 = vadd.f32 %v1806, %v1820
    %v1851 = vadd.f32 %v1807, %v1816
    %v1852 = vadd.f32 %v1808, %v1820
    %v1853 = vadd.f32 %v1809, %v1816
    %v1854 = vadd.f32 %v1810, %v1820
    %v1855 = vld [vmem:[%s17] sm:$0x3]
    %v1856 = vld [vmem:[#allocation2] sm:$0x1]
    %1858 = vset.pattern.permute.xlu0 0
    %1859 = vperm.xlu0 %1858, %v1856
    %v1860 = vpop.permute.xlu0 %1859
    %v1862 = vlaneseq
    %v1863 = vshrl.u32 %v1862, 7
    %v1864 = vsub.s32 0, %v1863
    %v1865 = vrot.slane %v1860, %v1864
    %v1867 = vlaneseq
    %v1868 = vshrl.u32 %v1867, 7
    %v1869 = vsub.s32 0, %v1868
    %v1870 = vrot.slane %v1855, %v1869
    %v1871 = vlaneseq
    %v1872 = vshrl.u32 %v1871, 7
    %v1873 = vsub.s32 1, %v1872
    %v1874 = vrot.slane %v1855, %v1873
    %1877 = vmatprep.subr.mxu0 %v1824
    %1878 = vmatpush1.xpose.msra.mxu0 %v1823
    %1879 = vmatprep.subr.mxu0 %v1826
    %1880 = vmatpush1.xpose.msra.mxu0 %v1825
    %1881 = vmatprep.subr.mxu0 %v1828
    %1882 = vmatpush1.xpose.msra.mxu0 %v1827
    %1883 = vmatprep.subr.mxu0 %v1830
    %1884 = vmatpush1.xpose.msra.mxu0 %v1829
    %1885 = vmatprep.subr.mxu0 %v1832
    %1886 = vmatpush1.xpose.msra.mxu0 %v1831
    %1887 = vmatprep.subr.mxu0 %v1834
    %1888 = vmatpush1.xpose.msra.mxu0 %v1833
    %1889 = vmatprep.subr.mxu0 %v1836
    %1890 = vmatpush1.xpose.msra.mxu0 %v1835
    %1891 = vmatprep.subr.mxu0 %v1838
    %1892 = vmatpush1.xpose.msra.mxu0 %v1837
    %1893 = vmatprep.subr.mxu0 %v1840
    %1894 = vmatpush1.xpose.msra.mxu0 %v1839
    %1895 = vmatprep.subr.mxu0 %v1842
    %1896 = vmatpush1.xpose.msra.mxu0 %v1841
    %1897 = vmatprep.subr.mxu0 %v1844
    %1898 = vmatpush1.xpose.msra.mxu0 %v1843
    %1899 = vmatprep.subr.mxu0 %v1846
    %1900 = vmatpush1.xpose.msra.mxu0 %v1845
    %1901 = vmatprep.subr.mxu0 %v1848
    %1902 = vmatpush1.xpose.msra.mxu0 %v1847
    %1903 = vmatprep.subr.mxu0 %v1850
    %1904 = vmatpush1.xpose.msra.mxu0 %v1849
    %1905 = vmatprep.subr.mxu0 %v1852
    %1906 = vmatpush1.xpose.msra.mxu0 %v1851
    %1907 = vmatprep.subr.mxu0 %v1854
    %1908 = vmatpush1.xpose.msra.mxu0 %v1853
    %1909 = vmatprep.subr.mxu0 0.0
    %1910 = vmatpush1.xpose.msra.mxu0 0.0
    %1911 = vmatprep.subr.mxu0 0.0
    %1912 = vmatpush1.xpose.msra.mxu0 0.0
    %1913 = vmatprep.subr.mxu0 0.0
    %1914 = vmatpush1.xpose.msra.mxu0 0.0
    %1915 = vmatprep.subr.mxu0 0.0
    %1916 = vmatpush1.xpose.msra.mxu0 0.0
    %1917 = vmatprep.subr.mxu0 0.0
    %1918 = vmatpush1.xpose.msra.mxu0 0.0
    %1919 = vmatprep.subr.mxu0 0.0
    %1920 = vmatpush1.xpose.msra.mxu0 0.0
    %1921 = vmatprep.subr.mxu0 0.0
    %1922 = vmatpush1.xpose.msra.mxu0 0.0
    %1923 = vmatprep.subr.mxu0 0.0
    %1924 = vmatpush1.xpose.msra.mxu0 0.0
    %1925 = vmatprep.subr.mxu0 0.0
    %1926 = vmatpush1.xpose.msra.mxu0 0.0
    %1927 = vmatprep.subr.mxu0 0.0
    %1928 = vmatpush1.xpose.msra.mxu0 0.0
    %1929 = vmatprep.subr.mxu0 0.0
    %1930 = vmatpush1.xpose.msra.mxu0 0.0
    %1931 = vmatprep.subr.mxu0 0.0
    %1932 = vmatpush1.xpose.msra.mxu0 0.0
    %1933 = vmatprep.subr.mxu0 0.0
    %1934 = vmatpush1.xpose.msra.mxu0 0.0
    %1935 = vmatprep.subr.mxu0 0.0
    %1936 = vmatpush1.xpose.msra.mxu0 0.0
    %1937 = vmatprep.subr.mxu0 0.0
    %1938 = vmatpush1.xpose.msra.mxu0 0.0
    %1939 = vmatprep.subr.mxu0 0.0
    %1940 = vmatpush1.xpose.msra.mxu0 0.0
    %1941 = vmatprep.mubr.f32.mxu0 %v1874
    %1942 = vmatmul.mubr.f32.gmra.mrb[0].mxu0 %v1870
    %v1943 = vpop.f32.mrb[0].mxu0
    %v1944 = vadd.f32 %v1865, %v1943
    %v1945 = vpop.f32.mrb[0].mxu0
    %1946 = vdwg.mxu0
    %v1947 = vlaneseq
    %v1948 = vshrl.u32 %v1947, 7
    %v1949 = vld [vmem:[%s3] sm:$0x1]
    %v1950 = vlaneseq
    %v1951 = vshrl.u32 %v1950, 7
    %v1952 = vsub.s32 0, %v1951
    %v1953 = vrot.slane %v1949, %v1952
    %vm1954 = vcmp.eq.s32.totalorder %v1948, %v1953
    %v1955 = vlaneseq
    %v1956 = vshrl.u32 %v1955, 7
    %v1957 = vsub.s32 0, %v1956
    %v1958 = vrot.slane %v1944, %v1957
    %v1959 = vsel %vm1954, %v1958, -1e+30
    %vm1960 = vcmask 1041408
    %v1961 = vsel %vm1960, %v1959, -inf
    %1962 = vmax.xlane.f32.xlu0 %v1961
    %v1963 = vpop.xlane.xlu0 %1962
    %v1964 = vsub.f32 %v1958, %v1963
    %v1965 = vmul.f32 %v1964, 1.442695
    %v1966 = vpow.pop %v1965
    %v1967 = vsel %vm1954, %v1966, 0.0
    %v1968 = vsel %vm1960, %v1967, 0.0
    %1969 = vadd.xlane.f32.xlu0 %v1968
    %v1970 = vpop.xlane.xlu0 %1969
    %v1971 = vmax.f32 %v1970, 1e-30
    %v1972 = vrcp.pop %v1971
    %v1973 = vmul.f32 %v1967, %v1972
    %1974 = vmatprep.subr.mxu0 %v1824
    %1975 = vmatpush1.msra.mxu0 %v1823
    %1976 = vmatprep.subr.mxu0 %v1826
    %1977 = vmatpush1.msra.mxu0 %v1825
    %1978 = vmatprep.subr.mxu0 %v1828
    %1979 = vmatpush1.msra.mxu0 %v1827
    %1980 = vmatprep.subr.mxu0 %v1830
    %1981 = vmatpush1.msra.mxu0 %v1829
    %1982 = vmatprep.subr.mxu0 %v1832
    %1983 = vmatpush1.msra.mxu0 %v1831
    %1984 = vmatprep.subr.mxu0 %v1834
    %1985 = vmatpush1.msra.mxu0 %v1833
    %1986 = vmatprep.subr.mxu0 %v1836
    %1987 = vmatpush1.msra.mxu0 %v1835
    %1988 = vmatprep.subr.mxu0 %v1838
    %1989 = vmatpush1.msra.mxu0 %v1837
    %1990 = vmatprep.subr.mxu0 %v1840
    %1991 = vmatpush1.msra.mxu0 %v1839
    %1992 = vmatprep.subr.mxu0 %v1842
    %1993 = vmatpush1.msra.mxu0 %v1841
    %1994 = vmatprep.subr.mxu0 %v1844
    %1995 = vmatpush1.msra.mxu0 %v1843
    %1996 = vmatprep.subr.mxu0 %v1846
    %1997 = vmatpush1.msra.mxu0 %v1845
    %1998 = vmatprep.subr.mxu0 %v1848
    %1999 = vmatpush1.msra.mxu0 %v1847
    %2000 = vmatprep.subr.mxu0 %v1850
    %2001 = vmatpush1.msra.mxu0 %v1849
    %2002 = vmatprep.subr.mxu0 %v1852
    %2003 = vmatpush1.msra.mxu0 %v1851
    %2004 = vmatprep.subr.mxu0 %v1854
    %2005 = vmatpush1.msra.mxu0 %v1853
    %2006 = vmatprep.subr.mxu0 0.0
    %2007 = vmatpush1.msra.mxu0 0.0
    %2008 = vmatprep.subr.mxu0 0.0
    %2009 = vmatpush1.msra.mxu0 0.0
    %2010 = vmatprep.subr.mxu0 0.0
    %2011 = vmatpush1.msra.mxu0 0.0
    %2012 = vmatprep.subr.mxu0 0.0
    %2013 = vmatpush1.msra.mxu0 0.0
    %2014 = vmatprep.subr.mxu0 0.0
    %2015 = vmatpush1.msra.mxu0 0.0
    %2016 = vmatprep.subr.mxu0 0.0
    %2017 = vmatpush1.msra.mxu0 0.0
    %2018 = vmatprep.subr.mxu0 0.0
    %2019 = vmatpush1.msra.mxu0 0.0
    %2020 = vmatprep.subr.mxu0 0.0
    %2021 = vmatpush1.msra.mxu0 0.0
    %2022 = vmatprep.subr.mxu0 0.0
    %2023 = vmatpush1.msra.mxu0 0.0
    %2024 = vmatprep.subr.mxu0 0.0
    %2025 = vmatpush1.msra.mxu0 0.0
    %2026 = vmatprep.subr.mxu0 0.0
    %2027 = vmatpush1.msra.mxu0 0.0
    %2028 = vmatprep.subr.mxu0 0.0
    %2029 = vmatpush1.msra.mxu0 0.0
    %2030 = vmatprep.subr.mxu0 0.0
    %2031 = vmatpush1.msra.mxu0 0.0
    %2032 = vmatprep.subr.mxu0 0.0
    %2033 = vmatpush1.msra.mxu0 0.0
    %2034 = vmatprep.subr.mxu0 0.0
    %2035 = vmatpush1.msra.mxu0 0.0
    %2036 = vmatprep.subr.mxu0 0.0
    %2037 = vmatpush1.msra.mxu0 0.0
    %2038 = vmatprep.mubr.f32.mxu0 0.0
    %2039 = vmatmul.mubr.f32.gmra.mrb[0].mxu0 %v1973
    %v2040 = vpop.f32.mrb[0].mxu0
    %v2041 = vadd.f32 0.0, %v2040
    %v2042 = vpop.f32.mrb[0].mxu0
    %v2043 = vadd.f32 0.0, %v2042
    %2044 = vdwg.mxu0
    %v2047 = vcombine.low %v2041, %v2043
    %v2049 = vunpack.c.l.s4 1983009808
    %v2050 = vunpack.c.0.s8 %v2049
    %v2051 = vlaneseq
    %v2052 = vshrl.u32 %v2051, 7
    %v2053 = vsub.s32 %v2050, %v2052
    %v2054 = vrot.slane %v2047, %v2053
    %2056 = vst [vmem:[#allocation9] sm:$0xf] %v2054
    %v2057 = vsel %vm1960, %v1973, 0.0
    %v2058 = vrot.slane %v2057, 4
    %v2059 = vadd.f32 %v2057, %v2058
    %v2060 = vrot.slane %v2059, 2
    %v2061 = vadd.f32 %v2059, %v2060
    %v2062 = vrot.slane %v2061, 1
    %v2063 = vadd.f32 %v2061, %v2062
    %2064 = vst [vmem:[#allocation10] sm:$0x1] %v2063
    // Predicated region
    $region104: #{tpu_custom_call.1} parent=1 // pred_check
      _
    $region105: #{tpu_custom_call.1} parent=1 // pred_check_branch
      %2066 = sbr.rel (0) target = $region107
    $region106: #{tpu_custom_call.1} parent=1 // pred_region
      %s2068 = ssub.s32 64, 64
      %2069 = vsyncadd [#allocation5], %s2068
      %s2071 = sshll.u32 [#allocation9], 4
      %s2072 = int_to_ptr.vmem [resolvable:$true] %s2071
      %2074 = dma.vmem_to_hbm [thread:$0]  %s2072, 64, %s19, [#allocation5]
    $region107: #{tpu_custom_call.1} parent=1 // pred_fallthru
      _
    // Predicated region
    $region108: #{tpu_custom_call.1} parent=1 // pred_check
      _
    $region109: #{tpu_custom_call.1} parent=1 // pred_check_branch
      %2076 = sbr.rel (0) target = $region111
    $region110: #{tpu_custom_call.1} parent=1 // pred_region
      %s2078 = ssub.s32 16, 16
      %2079 = vsyncadd [#allocation11], %s2078
      %s2081 = sshll.u32 [#allocation10], 4
      %s2082 = int_to_ptr.vmem [resolvable:$true] %s2081
      %2084 = dma.vmem_to_hbm [thread:$0]  %s2082, 16, %s20, [#allocation11]
    $region111: #{tpu_custom_call.1} parent=1 // pred_fallthru
      _
    // Predicated region
    $region112: #{tpu_custom_call.1} parent=1 // pred_check
      _
    $region113: #{tpu_custom_call.1} parent=1 // pred_check_branch
      %2086 = sbr.rel (0) target = $region115
    $region114: #{tpu_custom_call.1} parent=1 // pred_region
      %2087 = dma.done [#allocation5], 64
    $region115: #{tpu_custom_call.1} parent=1 // pred_fallthru
      _
    // Predicated region
    $region116: #{tpu_custom_call.1} parent=1 // pred_check
      _
    $region117: #{tpu_custom_call.1} parent=1 // pred_check_branch
      %2089 = sbr.rel (0) target = $region119
    $region118: #{tpu_custom_call.1} parent=1 // pred_region
      %2090 = dma.done [#allocation11], 16
    $region119: #{tpu_custom_call.1} parent=1 // pred_fallthru
      _
    %2091 = vsyncpa [#allocation4], 1
    %2092 = vsyncpa [#allocation7], 1
    %2093 = vsyncpa [#allocation5], 1
    %2094 = vsyncpa [#allocation11], 1

</llo_original>
